<compile_context>
chip_gen: v6e
topology: v6e:2x2x1
jax: 0.10.0
libtpu: 0.0.40
codegen_flags: <defaults>
</compile_context>

<pallas_src>
import jax
import jax.numpy as jnp
from jax.experimental import pallas as pl
from jax.experimental.pallas import tpu as pltpu


def _round_up(x, m):
    return ((x + m - 1) // m) * m


def _actor_kernel(scale_ref, x_ref, w1_ref, b1_ref, w2_ref, b2_ref, w3_ref,
                  b3_ref, out_ref):
    # All three matmuls run the native bf16 x bf16 MXU path with f32
    # accumulation; epilogues (bias, ReLU, tanh, scale) are f32 on the VPU/EUP.
    x = x_ref[...].astype(jnp.bfloat16)                       # (TB, S) bf16

    # Layer 1: Linear(state_dim, 400->512 padded) + ReLU
    h1 = jnp.dot(x, w1_ref[...],
                 preferred_element_type=jnp.float32) + b1_ref[...]
    h1 = jnp.maximum(h1, 0.0)

    # Layer 2: Linear(400->512, 300->384 padded) + ReLU
    h2 = jnp.dot(h1.astype(jnp.bfloat16), w2_ref[...],
                 preferred_element_type=jnp.float32) + b2_ref[...]
    h2 = jnp.maximum(h2, 0.0)

    # Layer 3: Linear(300->384, action_dim->128 padded), tanh, scale
    a = jnp.dot(h2.astype(jnp.bfloat16), w3_ref[...],
                preferred_element_type=jnp.float32) + b3_ref[...]
    out_ref[...] = (scale_ref[0, 0] * jnp.tanh(a)).astype(out_ref.dtype)


def _choose_batch_tiling(b, block_b):
    """Pick (tile_rows, num_tiles): tile_rows % 8 == 0, tile covers b with
    minimal padding, and >=2 (even) grid steps for large batches so the
    'parallel' batch axis can be sharded across both v7x TensorCores."""
    num_tiles = -(-b // block_b)                  # cdiv
    if b >= 256:
        num_tiles = max(num_tiles, 2)
        num_tiles += num_tiles % 2                # even split across 2 TCs
    tb = _round_up(-(-b // num_tiles), 8)
    return tb, num_tiles


def _vmem_budget(tb, state_dim, h1p, h2p, ap):
    """Honest scoped-VMEM cap: double-buffered I/O tiles + bf16 weight blocks
    (worst case double-buffered) + f32/bf16 activation intermediates, x2 slack."""
    io = 2 * tb * (state_dim + ap) * 4                       # state + out tiles
    weights = 2 * (state_dim * h1p + h1p * h2p + h2p * ap) * 2
    acts = tb * ((h1p + h2p) * (4 + 2) + ap * 4)             # f32 + bf16 copies
    return int(min(64 << 20, max(8 << 20, 2 * (io + weights + acts))))


def actor_forward(state, params, max_action, action_dim, *, block_b=1024,
                  out_dtype=jnp.float32):
    """Fused Actor_ forward pass on TPU via Pallas.

    state : (B, state_dim) f32
    params: padded params from init_actor_params (weights bf16, biases f32)
    Returns (B, action_dim) in `out_dtype` (f32 by default).
    """
    w1, b1, w2, b2, w3, b3 = params
    b, state_dim = state.shape
    h1p, h2p, ap = w1.shape[1], w2.shape[1], w3.shape[1]

    tb, num_tiles = _choose_batch_tiling(b, block_b)
    b_pad = tb * num_tiles
    if b_pad != b:
        state = jnp.pad(state, ((0, b_pad - b), (0, 0)))

    scale = jnp.full((1, 1), max_action, dtype=jnp.float32)

    def build(single_buffer_weights):
        if single_buffer_weights:
            # Constant index_map -> no need for a second pipeline buffer.
            def wspec(shape):
                return pl.BlockSpec(shape, lambda i: (0, 0),
                                    pipeline_mode=pl.Buffered(1))
        else:
            def wspec(shape):
                return pl.BlockSpec(shape, lambda i: (0, 0))

        return pl.pallas_call(
            _actor_kernel,
            grid=(num_tiles,),
            out_shape=jax.ShapeDtypeStruct((b_pad, ap), out_dtype),
            in_specs=[
                # runtime scalar (max_action) -> SMEM, no recompile per value
                pl.BlockSpec(memory_space=pltpu.MemorySpace.SMEM),
                # streamed state tile
                pl.BlockSpec((tb, state_dim), lambda i: (i, 0)),
                # weights / biases: DMA'd once, VMEM-resident
                wspec((state_dim, h1p)),
                wspec((1, h1p)),
                wspec((h1p, h2p)),
                wspec((1, h2p)),
                wspec((h2p, ap)),
                wspec((1, ap)),
            ],
            out_specs=pl.BlockSpec((tb, ap), lambda i: (i, 0)),
            compiler_params=pltpu.CompilerParams(
                dimension_semantics=("parallel",),        # 2-TC sharding on v7x
                vmem_limit_bytes=_vmem_budget(tb, state_dim, h1p, h2p, ap),
            ),
        )

    args = (scale, state, w1, b1, w2, b2, w3, b3)
    try:
        out = build(single_buffer_weights=True)(*args)
    except Exception:
        # JAX versions where BlockSpec.pipeline_mode isn't accepted by the TPU
        # pipeline: fall back to default double-buffering of the constant
        # weight blocks (VMEM-headroom optimization only, not correctness).
        out = build(single_buffer_weights=False)(*args)

    return out[:b, :action_dim]


def init_actor_params(key, state_dim, action_dim):
    """PyTorch-style init U(-1/sqrt(fan_in), 1/sqrt(fan_in)), then pad + cast.

    Weights are stored transposed as (in_features, out_features_padded) in
    bfloat16; biases are (1, out_features_padded) in float32. Padding is zeros,
    so the padded network is exactly equivalent to the unpadded one on the
    first `action_dim` output columns.
    """
    h1, h2 = 400, 300
    h1p, h2p = _round_up(h1, 128), _round_up(h2, 128)        # 512, 384
    ap = _round_up(action_dim, 128)                          # 128

    dims = [(state_dim, h1, state_dim, h1p),
            (h1, h2, h1p, h2p),
            (h2, action_dim, h2p, ap)]
    params = []
    for fan_in, fan_out, in_pad, out_pad in dims:
        key, kw, kb = jax.random.split(key, 3)
        bound = 1.0 / jnp.sqrt(jnp.float32(fan_in))
        w = jax.random.uniform(kw, (fan_in, fan_out), jnp.float32, -bound, bound)
        b = jax.random.uniform(kb, (1, fan_out), jnp.float32, -bound, bound)
        w = jnp.pad(w, ((0, in_pad - fan_in), (0, out_pad - fan_out)))
        b = jnp.pad(b, ((0, 0), (0, out_pad - fan_out)))
        params.extend([w.astype(jnp.bfloat16), b])
    return tuple(params)


def actor_forward_ref(state, params, max_action, action_dim):
    """Plain-JAX f32 reference using the same (bf16-rounded, padded) parameters."""
    w1, b1, w2, b2, w3, b3 = params
    h = jax.nn.relu(state @ w1.astype(jnp.float32) + b1)
    h = jax.nn.relu(h @ w2.astype(jnp.float32) + b2)
    a = max_action * jnp.tanh(h @ w3.astype(jnp.float32) + b3)
    return a[:, :action_dim]


if __name__ == "__main__":
    state_dim = 17     # small MuJoCo-like observation
    action_dim = 6
    batch = 2
    max_action = 1.0

    key = jax.random.PRNGKey(0)
    key, k_state = jax.random.split(key)

    params = init_actor_params(key, state_dim, action_dim)
    state = jax.random.normal(k_state, (batch, state_dim), jnp.float32)

    out = actor_forward(state, params, max_action, action_dim)
    out = jax.block_until_ready(out)

    ref = actor_forward_ref(state, params, max_action, action_dim)
    assert out.shape == (batch, action_dim)
    # bf16 weight storage + bf16-activation MXU dots (f32 accumulation):
    # allow small deviation vs the f32 reference.
    assert jnp.allclose(out, ref, atol=2e-2, rtol=2e-2), "mismatch vs reference"

    print("KERNEL_OK")
</pallas_src>

<mosaic_0001>
module attributes {stable_mosaic.version = 11 : i64} {
  func.func @_actor_kernel(%arg0: i32, %arg1: memref<1x1xf32, #tpu.memory_space<smem>>, %arg2: memref<8x17xf32, #tpu.memory_space<vmem>>, %arg3: memref<17x512xbf16, #tpu.memory_space<vmem>>, %arg4: memref<1x512xf32, #tpu.memory_space<vmem>>, %arg5: memref<512x384xbf16, #tpu.memory_space<vmem>>, %arg6: memref<1x384xf32, #tpu.memory_space<vmem>>, %arg7: memref<384x128xbf16, #tpu.memory_space<vmem>>, %arg8: memref<1x128xf32, #tpu.memory_space<vmem>>, %arg9: memref<8x128xf32, #tpu.memory_space<vmem>>) attributes {dimension_semantics = [#tpu.dimension_semantics<parallel>], iteration_bounds = array<i64: 1>, scalar_prefetch = 0 : i64, scratch_operands = 0 : i64, tpu.core_type = #tpu.core_type<tc>, window_params = [{transform_indices = @transform_0, window_bounds = array<i64: 1, 1>}, {transform_indices = @transform_1, window_bounds = array<i64: 8, 17>}, {pipeline_mode = #tpu.pipeline_mode<synchronous>, transform_indices = @transform_2, window_bounds = array<i64: 17, 512>}, {pipeline_mode = #tpu.pipeline_mode<synchronous>, transform_indices = @transform_3, window_bounds = array<i64: 1, 512>}, {pipeline_mode = #tpu.pipeline_mode<synchronous>, transform_indices = @transform_4, window_bounds = array<i64: 512, 384>}, {pipeline_mode = #tpu.pipeline_mode<synchronous>, transform_indices = @transform_5, window_bounds = array<i64: 1, 384>}, {pipeline_mode = #tpu.pipeline_mode<synchronous>, transform_indices = @transform_6, window_bounds = array<i64: 384, 128>}, {pipeline_mode = #tpu.pipeline_mode<synchronous>, transform_indices = @transform_7, window_bounds = array<i64: 1, 128>}, {transform_indices = @transform_8, window_bounds = array<i64: 8, 128>}]} {
    %c0 = arith.constant 0 : index
    %c0_0 = arith.constant 0 : index
    %0 = vector.load %arg2[%c0, %c0_0] : memref<8x17xf32, #tpu.memory_space<vmem>>, vector<8x17xf32>
    %1 = arith.truncf %0 : vector<8x17xf32> to vector<8x17xbf16>
    %c0_1 = arith.constant 0 : index
    %c0_2 = arith.constant 0 : index
    %2 = vector.load %arg3[%c0_1, %c0_2] : memref<17x512xbf16, #tpu.memory_space<vmem>>, vector<17x512xbf16>
    %cst = arith.constant dense<0.000000e+00> : vector<8x512xf32>
    %3 = tpu.matmul %1, %2, %cst {dimension_numbers = #tpu.dot_dimension_numbers<[1], [0], [0], [1], [0, 0, 1, 1], [], []>} : vector<8x17xbf16>, vector<17x512xbf16>, vector<8x512xf32> -> vector<8x512xf32>
    %c0_3 = arith.constant 0 : index
    %c0_4 = arith.constant 0 : index
    %4 = vector.load %arg4[%c0_3, %c0_4] : memref<1x512xf32, #tpu.memory_space<vmem>>, vector<1x512xf32>
    %5 = vector.broadcast %4 : vector<1x512xf32> to vector<8x512xf32>
    %6 = arith.addf %3, %5 : vector<8x512xf32>
    %cst_5 = arith.constant 0.000000e+00 : f32
    %7 = vector.broadcast %cst_5 : f32 to vector<8x512xf32>
    %8 = arith.maximumf %6, %7 : vector<8x512xf32>
    %9 = arith.truncf %8 : vector<8x512xf32> to vector<8x512xbf16>
    %c0_6 = arith.constant 0 : index
    %c0_7 = arith.constant 0 : index
    %10 = vector.load %arg5[%c0_6, %c0_7] : memref<512x384xbf16, #tpu.memory_space<vmem>>, vector<512x384xbf16>
    %cst_8 = arith.constant dense<0.000000e+00> : vector<8x384xf32>
    %11 = tpu.matmul %9, %10, %cst_8 {dimension_numbers = #tpu.dot_dimension_numbers<[1], [0], [0], [1], [0, 0, 1, 1], [], []>} : vector<8x512xbf16>, vector<512x384xbf16>, vector<8x384xf32> -> vector<8x384xf32>
    %c0_9 = arith.constant 0 : index
    %c0_10 = arith.constant 0 : index
    %12 = vector.load %arg6[%c0_9, %c0_10] : memref<1x384xf32, #tpu.memory_space<vmem>>, vector<1x384xf32>
    %13 = vector.broadcast %12 : vector<1x384xf32> to vector<8x384xf32>
    %14 = arith.addf %11, %13 : vector<8x384xf32>
    %cst_11 = arith.constant 0.000000e+00 : f32
    %15 = vector.broadcast %cst_11 : f32 to vector<8x384xf32>
    %16 = arith.maximumf %14, %15 : vector<8x384xf32>
    %17 = arith.truncf %16 : vector<8x384xf32> to vector<8x384xbf16>
    %c0_12 = arith.constant 0 : index
    %c0_13 = arith.constant 0 : index
    %18 = vector.load %arg7[%c0_12, %c0_13] : memref<384x128xbf16, #tpu.memory_space<vmem>>, vector<384x128xbf16>
    %cst_14 = arith.constant dense<0.000000e+00> : vector<8x128xf32>
    %19 = tpu.matmul %17, %18, %cst_14 {dimension_numbers = #tpu.dot_dimension_numbers<[1], [0], [0], [1], [0, 0, 1, 1], [], []>} : vector<8x384xbf16>, vector<384x128xbf16>, vector<8x128xf32> -> vector<8x128xf32>
    %c0_15 = arith.constant 0 : index
    %c0_16 = arith.constant 0 : index
    %20 = vector.load %arg8[%c0_15, %c0_16] : memref<1x128xf32, #tpu.memory_space<vmem>>, vector<1x128xf32>
    %21 = vector.broadcast %20 : vector<1x128xf32> to vector<8x128xf32>
    %22 = arith.addf %19, %21 : vector<8x128xf32>
    %c0_17 = arith.constant 0 : index
    %c0_18 = arith.constant 0 : index
    %23 = memref.load %arg1[%c0_17, %c0_18] : memref<1x1xf32, #tpu.memory_space<smem>>
    %24 = math.tanh %22 : vector<8x128xf32>
    %25 = vector.broadcast %23 : f32 to vector<8x128xf32>
    %26 = arith.mulf %25, %24 : vector<8x128xf32>
    %c0_19 = arith.constant 0 : index
    %c0_20 = arith.constant 0 : index
    %27 = vector.load %arg9[%c0_19, %c0_20] : memref<8x128xf32, #tpu.memory_space<vmem>>, vector<8x128xf32>
    tpu.vector_store %arg9[%c0_19, %c0_20], %26 {strides = array<i32>} : memref<8x128xf32, #tpu.memory_space<vmem>>, vector<8x128xf32>,
    return
  }
  func.func @transform_0(%arg0: i32) -> (i32, i32) {
    %c0_i32 = arith.constant 0 : i32
    %c0_i32_0 = arith.constant 0 : i32
    %c0_i32_1 = arith.constant 0 : i32
    return %c0_i32, %c0_i32_0 : i32, i32
  }
  func.func @transform_1(%arg0: i32) -> (i32, i32) {
    %c0_i32 = arith.constant 0 : i32
    %c0_i32_0 = arith.constant 0 : i32
    return %arg0, %c0_i32 : i32, i32
  }
  func.func @transform_2(%arg0: i32) -> (i32, i32) {
    %c0_i32 = arith.constant 0 : i32
    %c0_i32_0 = arith.constant 0 : i32
    %c0_i32_1 = arith.constant 0 : i32
    return %c0_i32, %c0_i32_0 : i32, i32
  }
  func.func @transform_3(%arg0: i32) -> (i32, i32) {
    %c0_i32 = arith.constant 0 : i32
    %c0_i32_0 = arith.constant 0 : i32
    %c0_i32_1 = arith.constant 0 : i32
    return %c0_i32, %c0_i32_0 : i32, i32
  }
  func.func @transform_4(%arg0: i32) -> (i32, i32) {
    %c0_i32 = arith.constant 0 : i32
    %c0_i32_0 = arith.constant 0 : i32
    %c0_i32_1 = arith.constant 0 : i32
    return %c0_i32, %c0_i32_0 : i32, i32
  }
  func.func @transform_5(%arg0: i32) -> (i32, i32) {
    %c0_i32 = arith.constant 0 : i32
    %c0_i32_0 = arith.constant 0 : i32
    %c0_i32_1 = arith.constant 0 : i32
    return %c0_i32, %c0_i32_0 : i32, i32
  }
  func.func @transform_6(%arg0: i32) -> (i32, i32) {
    %c0_i32 = arith.constant 0 : i32
    %c0_i32_0 = arith.constant 0 : i32
    %c0_i32_1 = arith.constant 0 : i32
    return %c0_i32, %c0_i32_0 : i32, i32
  }
  func.func @transform_7(%arg0: i32) -> (i32, i32) {
    %c0_i32 = arith.constant 0 : i32
    %c0_i32_0 = arith.constant 0 : i32
    %c0_i32_1 = arith.constant 0 : i32
    return %c0_i32, %c0_i32_0 : i32, i32
  }
  func.func @transform_8(%arg0: i32) -> (i32, i32) {
    %c0_i32 = arith.constant 0 : i32
    %c0_i32_0 = arith.constant 0 : i32
    return %arg0, %c0_i32 : i32, i32
  }
}

module attributes {stable_mosaic.version = 11 : i64} {
  func.func @_actor_kernel(%arg0: i32, %arg1: memref<1x1xf32, #tpu.memory_space<smem>>, %arg2: memref<8x17xf32, #tpu.memory_space<vmem>>, %arg3: memref<17x512xbf16, #tpu.memory_space<vmem>>, %arg4: memref<1x512xf32, #tpu.memory_space<vmem>>, %arg5: memref<512x384xbf16, #tpu.memory_space<vmem>>, %arg6: memref<1x384xf32, #tpu.memory_space<vmem>>, %arg7: memref<384x128xbf16, #tpu.memory_space<vmem>>, %arg8: memref<1x128xf32, #tpu.memory_space<vmem>>, %arg9: memref<8x128xf32, #tpu.memory_space<vmem>>) attributes {dimension_semantics = [#tpu.dimension_semantics<parallel>], iteration_bounds = array<i64: 1>, scalar_prefetch = 0 : i64, scratch_operands = 0 : i64, tpu.core_type = #tpu.core_type<tc>, window_params = [{transform_indices = @transform_0, window_bounds = array<i64: 1, 1>}, {transform_indices = @transform_1, window_bounds = array<i64: 8, 17>}, {pipeline_mode = #tpu.pipeline_mode<synchronous>, transform_indices = @transform_2, window_bounds = array<i64: 17, 512>}, {pipeline_mode = #tpu.pipeline_mode<synchronous>, transform_indices = @transform_3, window_bounds = array<i64: 1, 512>}, {pipeline_mode = #tpu.pipeline_mode<synchronous>, transform_indices = @transform_4, window_bounds = array<i64: 512, 384>}, {pipeline_mode = #tpu.pipeline_mode<synchronous>, transform_indices = @transform_5, window_bounds = array<i64: 1, 384>}, {pipeline_mode = #tpu.pipeline_mode<synchronous>, transform_indices = @transform_6, window_bounds = array<i64: 384, 128>}, {pipeline_mode = #tpu.pipeline_mode<synchronous>, transform_indices = @transform_7, window_bounds = array<i64: 1, 128>}, {transform_indices = @transform_8, window_bounds = array<i64: 8, 128>}]} {
    %c0 = arith.constant 0 : index
    %c0_0 = arith.constant 0 : index
    %0 = vector.load %arg2[%c0, %c0_0] : memref<8x17xf32, #tpu.memory_space<vmem>>, vector<8x17xf32>
    %1 = arith.truncf %0 : vector<8x17xf32> to vector<8x17xbf16>
    %c0_1 = arith.constant 0 : index
    %c0_2 = arith.constant 0 : index
    %2 = vector.load %arg3[%c0_1, %c0_2] : memref<17x512xbf16, #tpu.memory_space<vmem>>, vector<17x512xbf16>
    %cst = arith.constant dense<0.000000e+00> : vector<8x512xf32>
    %3 = tpu.matmul %1, %2, %cst {dimension_numbers = #tpu.dot_dimension_numbers<[1], [0], [0], [1], [0, 0, 1, 1], [], []>} : vector<8x17xbf16>, vector<17x512xbf16>, vector<8x512xf32> -> vector<8x512xf32>
    %c0_3 = arith.constant 0 : index
    %c0_4 = arith.constant 0 : index
    %4 = vector.load %arg4[%c0_3, %c0_4] : memref<1x512xf32, #tpu.memory_space<vmem>>, vector<1x512xf32>
    %5 = vector.broadcast %4 : vector<1x512xf32> to vector<8x512xf32>
    %6 = arith.addf %3, %5 : vector<8x512xf32>
    %cst_5 = arith.constant 0.000000e+00 : f32
    %7 = vector.broadcast %cst_5 : f32 to vector<8x512xf32>
    %8 = arith.maximumf %6, %7 : vector<8x512xf32>
    %9 = arith.truncf %8 : vector<8x512xf32> to vector<8x512xbf16>
    %c0_6 = arith.constant 0 : index
    %c0_7 = arith.constant 0 : index
    %10 = vector.load %arg5[%c0_6, %c0_7] : memref<512x384xbf16, #tpu.memory_space<vmem>>, vector<512x384xbf16>
    %cst_8 = arith.constant dense<0.000000e+00> : vector<8x384xf32>
    %11 = tpu.matmul %9, %10, %cst_8 {dimension_numbers = #tpu.dot_dimension_numbers<[1], [0], [0], [1], [0, 0, 1, 1], [], []>} : vector<8x512xbf16>, vector<512x384xbf16>, vector<8x384xf32> -> vector<8x384xf32>
    %c0_9 = arith.constant 0 : index
    %c0_10 = arith.constant 0 : index
    %12 = vector.load %arg6[%c0_9, %c0_10] : memref<1x384xf32, #tpu.memory_space<vmem>>, vector<1x384xf32>
    %13 = vector.broadcast %12 : vector<1x384xf32> to vector<8x384xf32>
    %14 = arith.addf %11, %13 : vector<8x384xf32>
    %cst_11 = arith.constant 0.000000e+00 : f32
    %15 = vector.broadcast %cst_11 : f32 to vector<8x384xf32>
    %16 = arith.maximumf %14, %15 : vector<8x384xf32>
    %17 = arith.truncf %16 : vector<8x384xf32> to vector<8x384xbf16>
    %c0_12 = arith.constant 0 : index
    %c0_13 = arith.constant 0 : index
    %18 = vector.load %arg7[%c0_12, %c0_13] : memref<384x128xbf16, #tpu.memory_space<vmem>>, vector<384x128xbf16>
    %cst_14 = arith.constant dense<0.000000e+00> : vector<8x128xf32>
    %19 = tpu.matmul %17, %18, %cst_14 {dimension_numbers = #tpu.dot_dimension_numbers<[1], [0], [0], [1], [0, 0, 1, 1], [], []>} : vector<8x384xbf16>, vector<384x128xbf16>, vector<8x128xf32> -> vector<8x128xf32>
    %c0_15 = arith.constant 0 : index
    %c0_16 = arith.constant 0 : index
    %20 = vector.load %arg8[%c0_15, %c0_16] : memref<1x128xf32, #tpu.memory_space<vmem>>, vector<1x128xf32>
    %21 = vector.broadcast %20 : vector<1x128xf32> to vector<8x128xf32>
    %22 = arith.addf %19, %21 : vector<8x128xf32>
    %c0_17 = arith.constant 0 : index
    %c0_18 = arith.constant 0 : index
    %23 = memref.load %arg1[%c0_17, %c0_18] : memref<1x1xf32, #tpu.memory_space<smem>>
    %24 = math.tanh %22 : vector<8x128xf32>
    %25 = vector.broadcast %23 : f32 to vector<8x128xf32>
    %26 = arith.mulf %25, %24 : vector<8x128xf32>
    %c0_19 = arith.constant 0 : index
    %c0_20 = arith.constant 0 : index
    %27 = vector.load %arg9[%c0_19, %c0_20] : memref<8x128xf32, #tpu.memory_space<vmem>>, vector<8x128xf32>
    tpu.vector_store %arg9[%c0_19, %c0_20], %26 {strides = array<i32>} : memref<8x128xf32, #tpu.memory_space<vmem>>, vector<8x128xf32>,
    return
  }
  func.func @transform_0(%arg0: i32) -> (i32, i32) {
    %c0_i32 = arith.constant 0 : i32
    %c0_i32_0 = arith.constant 0 : i32
    %c0_i32_1 = arith.constant 0 : i32
    return %c0_i32, %c0_i32_0 : i32, i32
  }
  func.func @transform_1(%arg0: i32) -> (i32, i32) {
    %c0_i32 = arith.constant 0 : i32
    %c0_i32_0 = arith.constant 0 : i32
    return %arg0, %c0_i32 : i32, i32
  }
  func.func @transform_2(%arg0: i32) -> (i32, i32) {
    %c0_i32 = arith.constant 0 : i32
    %c0_i32_0 = arith.constant 0 : i32
    %c0_i32_1 = arith.constant 0 : i32
    return %c0_i32, %c0_i32_0 : i32, i32
  }
  func.func @transform_3(%arg0: i32) -> (i32, i32) {
    %c0_i32 = arith.constant 0 : i32
    %c0_i32_0 = arith.constant 0 : i32
    %c0_i32_1 = arith.constant 0 : i32
    return %c0_i32, %c0_i32_0 : i32, i32
  }
  func.func @transform_4(%arg0: i32) -> (i32, i32) {
    %c0_i32 = arith.constant 0 : i32
    %c0_i32_0 = arith.constant 0 : i32
    %c0_i32_1 = arith.constant 0 : i32
    return %c0_i32, %c0_i32_0 : i32, i32
  }
  func.func @transform_5(%arg0: i32) -> (i32, i32) {
    %c0_i32 = arith.constant 0 : i32
    %c0_i32_0 = arith.constant 0 : i32
    %c0_i32_1 = arith.constant 0 : i32
    return %c0_i32, %c0_i32_0 : i32, i32
  }
  func.func @transform_6(%arg0: i32) -> (i32, i32) {
    %c0_i32 = arith.constant 0 : i32
    %c0_i32_0 = arith.constant 0 : i32
    %c0_i32_1 = arith.constant 0 : i32
    return %c0_i32, %c0_i32_0 : i32, i32
  }
  func.func @transform_7(%arg0: i32) -> (i32, i32) {
    %c0_i32 = arith.constant 0 : i32
    %c0_i32_0 = arith.constant 0 : i32
    %c0_i32_1 = arith.constant 0 : i32
    return %c0_i32, %c0_i32_0 : i32, i32
  }
  func.func @transform_8(%arg0: i32) -> (i32, i32) {
    %c0_i32 = arith.constant 0 : i32
    %c0_i32_0 = arith.constant 0 : i32
    return %arg0, %c0_i32 : i32, i32
  }
}

</mosaic_0001>

<llo_original>
// kernel: tpu_custom_call.1
$region0: #{tpu_custom_call.1}
  #allocation0 [shape = 'u32[]', space=smem, size = 0x4, offset = 0x4, fixed_abs, tag = 'smem constant byte address 0x4 - core index']
  #allocation1 [shape = 'u32[144,128]{1,0:T(1,128)}', space=vmem, size = 0x12000, scoped, tag = 'internal scratch']
  #allocation2 [shape = 'f32[1,1]{1,0:T(1,128)S(6)}', space=smem, size = 0x200, scoped, tag = 'scoped memory for tpu_custom_call.1']
  %s0 = inlined_call_operand.<no memory space> [shape: f32[1,1], index: 0, kind: input, shape index: {}]
  %s1 = inlined_call_operand.hbm [shape: f32[8,17], index: 1, kind: input, shape index: {}]
  %s2 = inlined_call_operand.hbm [shape: bf16[17,512], index: 2, kind: input, shape index: {}]
  %s3 = inlined_call_operand.vmem [shape: f32[1,512], index: 3, kind: input, shape index: {}]
  %s4 = inlined_call_operand.hbm [shape: bf16[512,384], index: 4, kind: input, shape index: {}]
  %s5 = inlined_call_operand.vmem [shape: f32[1,384], index: 5, kind: input, shape index: {}]
  %s6 = inlined_call_operand.hbm [shape: bf16[384,128], index: 6, kind: input, shape index: {}]
  %s7 = inlined_call_operand.vmem [shape: f32[1,128], index: 7, kind: input, shape index: {}]
  %s8 = inlined_call_operand.hbm [shape: f32[8,128], index: 8, kind: output, shape index: {}]
  %s9 = sld [smem:[#allocation0]]
  $region58: #{tpu_custom_call.1} parent=0
    _
  %s11 = ssub.s32 1, %s9
  %s12 = scalar_select 0, %s11, %s9
  %13 = sst [smem:[#allocation2]] %s0
  $region1: #{tpu_custom_call.1} parent=0
    #allocation3 [shape = 'u8[4096]{0}', space=vmem, size = 0x1000, scoped, tag = 'input window, operand 1, single buffered']
    #allocation4 [shape = 's32[1]{0}', space=sflag, size = 0x4, scoped, tag = 'scoped memory for tpu_custom_call.1']
    #allocation5 [shape = 's32[1]{0}', space=sflag, size = 0x4, scoped, tag = 'scoped memory for tpu_custom_call.1']
    #allocation6 [shape = 'u8[24576]{0}', space=vmem, size = 0x6000, scoped, tag = 'input window, operand 2, single buffered']
    #allocation7 [shape = 's32[1]{0}', space=sflag, size = 0x4, scoped, tag = 'scoped memory for tpu_custom_call.1']
    #allocation8 [shape = 'u8[393216]{0}', space=vmem, size = 0x60000, scoped, tag = 'input window, operand 4, single buffered']
    #allocation9 [shape = 'u8[98304]{0}', space=vmem, size = 0x18000, scoped, tag = 'input window, operand 6, single buffered']
    #allocation10 [shape = 's32[1]{0}', space=sflag, size = 0x4, scoped, tag = 'scoped memory for tpu_custom_call.1']
    #allocation11 [shape = 'u8[4096]{0}', space=vmem, size = 0x1000, scoped, tag = 'output window, operand 0, single buffered']
    %14 = vsyncpa [#allocation4], 0
    %15 = vsyncpa [#allocation7], 0
    %16 = vsyncpa [#allocation10], 0
    %17 = vsyncpa [#allocation5], 0
    // Predicated region
    $region2: #{tpu_custom_call.1} parent=1 // pred_check
      _
    $region3: #{tpu_custom_call.1} parent=1 // pred_check_branch
      %19 = sbr.rel (0) target = $region5
    $region4: #{tpu_custom_call.1} parent=1 // pred_region
      _
    $region5: #{tpu_custom_call.1} parent=1 // pred_fallthru
      _
    // Predicated region
    $region6: #{tpu_custom_call.1} parent=1 // pred_check
      _
    $region7: #{tpu_custom_call.1} parent=1 // pred_check_branch
      %21 = sbr.rel (0) target = $region9
    $region8: #{tpu_custom_call.1} parent=1 // pred_region
      %s23 = ssub.s32 128, 128
      %24 = vsyncadd [#allocation4], %s23
      %s26 = sshll.u32 [#allocation3], 4
      %s27 = int_to_ptr.vmem [resolvable:$true] %s26
      %29 = dma.hbm_to_vmem [thread:$0]  %s1, 128, %s27, [#allocation4]
    $region9: #{tpu_custom_call.1} parent=1 // pred_fallthru
      _
    // Predicated region
    $region10: #{tpu_custom_call.1} parent=1 // pred_check
      _
    $region11: #{tpu_custom_call.1} parent=1 // pred_check_branch
      %31 = sbr.rel (0) target = $region13
    $region12: #{tpu_custom_call.1} parent=1 // pred_region
      %s33 = ssub.s32 768, 768
      %34 = vsyncadd [#allocation7], %s33
      %s35 = sshll.u32 [#allocation6], 4
      %s36 = int_to_ptr.vmem [resolvable:$true] %s35
      %41 = dma.hbm_to_vmem [thread:$0]  %s2, 768, %s36, [#allocation7], 256, 256, 16
    $region13: #{tpu_custom_call.1} parent=1 // pred_fallthru
      _
    // Predicated region
    $region14: #{tpu_custom_call.1} parent=1 // pred_check
      _
    $region15: #{tpu_custom_call.1} parent=1 // pred_check_branch
      %43 = sbr.rel (0) target = $region17
    $region16: #{tpu_custom_call.1} parent=1 // pred_region
      _
    $region17: #{tpu_custom_call.1} parent=1 // pred_fallthru
      _
    // Predicated region
    $region18: #{tpu_custom_call.1} parent=1 // pred_check
      _
    $region19: #{tpu_custom_call.1} parent=1 // pred_check_branch
      %45 = sbr.rel (0) target = $region21
    $region20: #{tpu_custom_call.1} parent=1 // pred_region
      %s47 = ssub.s32 12288, 12288
      %48 = vsyncadd [#allocation7], %s47
      %s49 = sshll.u32 [#allocation8], 4
      %s50 = int_to_ptr.vmem [resolvable:$true] %s49
      %55 = dma.hbm_to_vmem [thread:$0]  %s4, 12288, %s50, [#allocation7], 192, 192, 12
    $region21: #{tpu_custom_call.1} parent=1 // pred_fallthru
      _
    // Predicated region
    $region22: #{tpu_custom_call.1} parent=1 // pred_check
      _
    $region23: #{tpu_custom_call.1} parent=1 // pred_check_branch
      %57 = sbr.rel (0) target = $region25
    $region24: #{tpu_custom_call.1} parent=1 // pred_region
      _
    $region25: #{tpu_custom_call.1} parent=1 // pred_fallthru
      _
    // Predicated region
    $region26: #{tpu_custom_call.1} parent=1 // pred_check
      _
    $region27: #{tpu_custom_call.1} parent=1 // pred_check_branch
      %59 = sbr.rel (0) target = $region29
    $region28: #{tpu_custom_call.1} parent=1 // pred_region
      %s61 = ssub.s32 3072, 3072
      %62 = vsyncadd [#allocation10], %s61
      %s63 = sshll.u32 [#allocation9], 4
      %s64 = int_to_ptr.vmem [resolvable:$true] %s63
      %69 = dma.hbm_to_vmem [thread:$0]  %s6, 3072, %s64, [#allocation10], 64, 64, 4
    $region29: #{tpu_custom_call.1} parent=1 // pred_fallthru
      _
    // Predicated region
    $region30: #{tpu_custom_call.1} parent=1 // pred_check
      _
    $region31: #{tpu_custom_call.1} parent=1 // pred_check_branch
      %71 = sbr.rel (0) target = $region33
    $region32: #{tpu_custom_call.1} parent=1 // pred_region
      _
    $region33: #{tpu_custom_call.1} parent=1 // pred_fallthru
      _
    // Predicated region
    $region34: #{tpu_custom_call.1} parent=1 // pred_check
      _
    $region35: #{tpu_custom_call.1} parent=1 // pred_check_branch
      %73 = sbr.rel (0) target = $region37
    $region36: #{tpu_custom_call.1} parent=1 // pred_region
      %74 = dma.done [#allocation4], 128
    $region37: #{tpu_custom_call.1} parent=1 // pred_fallthru
      _
    // Predicated region
    $region38: #{tpu_custom_call.1} parent=1 // pred_check
      _
    $region39: #{tpu_custom_call.1} parent=1 // pred_check_branch
      %76 = sbr.rel (0) target = $region41
    $region40: #{tpu_custom_call.1} parent=1 // pred_region
      %77 = dma.done [#allocation7], 768
    $region41: #{tpu_custom_call.1} parent=1 // pred_fallthru
      _
    // Predicated region
    $region42: #{tpu_custom_call.1} parent=1 // pred_check
      _
    $region43: #{tpu_custom_call.1} parent=1 // pred_check_branch
      %79 = sbr.rel (0) target = $region45
    $region44: #{tpu_custom_call.1} parent=1 // pred_region
      %80 = dma.done [#allocation7], 12288
    $region45: #{tpu_custom_call.1} parent=1 // pred_fallthru
      _
    // Predicated region
    $region46: #{tpu_custom_call.1} parent=1 // pred_check
      _
    $region47: #{tpu_custom_call.1} parent=1 // pred_check_branch
      %82 = sbr.rel (0) target = $region49
    $region48: #{tpu_custom_call.1} parent=1 // pred_region
      %83 = dma.done [#allocation10], 3072
    $region49: #{tpu_custom_call.1} parent=1 // pred_fallthru
      _
    %v85 = vld [vmem:[#allocation3] sm:$0xff]
    %v86 = vpack.c.bf16 %v85, %v85
    %v87 = vld [vmem:[#allocation6] sm:$0xff]
    %v88 = vld [vmem:[#allocation6 + $0x8] sm:$0xff]
    %v89 = vld [vmem:[#allocation6 + $0x10] sm:$0xff]
    %v90 = vld [vmem:[#allocation6 + $0x18] sm:$0xff]
    %v91 = vld [vmem:[#allocation6 + $0x20] sm:$0x11]
    %v92 = vld [vmem:[#allocation6 + $0x28] sm:$0x11]
    %v93 = vld [vmem:[%s3] sm:$0xf]
    %v95 = vlaneseq
    %v96 = vshrl.u32 %v95, 7
    %v97 = vsub.s32 0, %v96
    %v98 = vrot.slane %v93, %v97
    %v99 = vlaneseq
    %v100 = vshrl.u32 %v99, 7
    %v101 = vsub.s32 1, %v100
    %v102 = vrot.slane %v93, %v101
    %v103 = vlaneseq
    %v104 = vshrl.u32 %v103, 7
    %v105 = vsub.s32 2, %v104
    %v106 = vrot.slane %v93, %v105
    %v107 = vlaneseq
    %v108 = vshrl.u32 %v107, 7
    %v109 = vsub.s32 3, %v108
    %v110 = vrot.slane %v93, %v109
    %v121 = vunpack.c.l.b16 %v87
    %v122 = vunpack.c.h.b16 %v87
    %v123 = vunpack.c.l.b16 %v88
    %v124 = vunpack.c.h.b16 %v88
    %v125 = vunpack.c.l.b16 %v89
    %v126 = vunpack.c.h.b16 %v89
    %v127 = vunpack.c.l.b16 %v90
    %v128 = vunpack.c.h.b16 %v90
    %v129 = vunpack.c.l.b16 %v91
    %v130 = vunpack.c.h.b16 %v91
    %v131 = vunpack.c.l.b16 %v92
    %v132 = vunpack.c.h.b16 %v92
    %v133 = vpack.c.b16 %v125, %v121
    %v134 = vpack.c.b16 %v126, %v122
    %v135 = vpack.c.b16 %v127, %v123
    %v136 = vpack.c.b16 %v128, %v124
    %v137 = vpack.c.b16 %v129, %v129
    %v138 = vpack.c.b16 %v130, %v130
    %v139 = vpack.c.b16 %v131, %v131
    %v140 = vpack.c.b16 %v132, %v132
    %vm145 = vcmask 138240
    %v147 = vsel %vm145, %v86, 0
    %vm149 = vcmask 1040384
    %v150 = vsel 0, 4294967295, 65535
    %v151 = vsel %vm149, %v150, 0
    %v153 = vand.u32 %v137, %v151
    %v156 = vand.u32 %v138, %v151
    %v159 = vand.u32 %v139, %v151
    %v162 = vand.u32 %v140, %v151
    %164 = vmatprep.subr.bf16.mxu0 0
    %165 = vmatpush1.bf16.msra.mxu0 0
    %166 = vmatprep.subr.bf16.mxu0 0
    %167 = vmatpush1.bf16.msra.mxu0 0
    %168 = vmatprep.subr.bf16.mxu0 0
    %169 = vmatpush1.bf16.msra.mxu0 0
    %170 = vmatprep.subr.bf16.mxu0 0
    %171 = vmatpush1.bf16.msra.mxu0 0
    %172 = vmatprep.subr.bf16.mxu0 0
    %173 = vmatpush1.bf16.msra.mxu0 0
    %174 = vmatprep.subr.bf16.mxu0 0
    %175 = vmatpush1.bf16.msra.mxu0 0
    %176 = vmatprep.subr.bf16.mxu0 %v156
    %177 = vmatpush1.bf16.msra.mxu0 %v153
    %178 = vmatprep.subr.bf16.mxu0 %v134
    %179 = vmatpush1.bf16.msra.mxu0 %v133
    %180 = vmatprep.subr.bf16.mxu0 0
    %181 = vmatpush2.bf16.msra.mxu0 0
    %182 = vmatprep.subr.bf16.mxu0 0
    %183 = vmatpush2.bf16.msra.mxu0 0
    %184 = vmatprep.subr.bf16.mxu0 0
    %185 = vmatpush2.bf16.msra.mxu0 0
    %186 = vmatprep.subr.bf16.mxu0 0
    %187 = vmatpush2.bf16.msra.mxu0 0
    %188 = vmatprep.subr.bf16.mxu0 0
    %189 = vmatpush2.bf16.msra.mxu0 0
    %190 = vmatprep.subr.bf16.mxu0 0
    %191 = vmatpush2.bf16.msra.mxu0 0
    %192 = vmatprep.subr.bf16.mxu0 0
    %193 = vmatpush2.bf16.msra.mxu0 0
    %194 = vmatprep.subr.bf16.mxu0 0
    %195 = vmatpush2.bf16.msra.mxu0 0
    %196 = vmatprep.mubr.bf16.mxu0 0
    %197 = vmatmul.mubr.bf16.gmra.mxu0 %v147
    %v198 = vpop.f32.mrf.mxu0
    %v199 = vadd.f32 %v98, %v198
    %v200 = vpop.f32.mrf.mxu0
    %v201 = vadd.f32 %v102, %v200
    %v202 = vpop.f32.mrf.mxu0
    %v203 = vpop.f32.mrf.mxu0
    %204 = vdwg.mxu0
    %205 = vmatprep.subr.bf16.mxu0 0
    %206 = vmatpush1.bf16.msra.mxu0 0
    %207 = vmatprep.subr.bf16.mxu0 0
    %208 = vmatpush1.bf16.msra.mxu0 0
    %209 = vmatprep.subr.bf16.mxu0 0
    %210 = vmatpush1.bf16.msra.mxu0 0
    %211 = vmatprep.subr.bf16.mxu0 0
    %212 = vmatpush1.bf16.msra.mxu0 0
    %213 = vmatprep.subr.bf16.mxu0 0
    %214 = vmatpush1.bf16.msra.mxu0 0
    %215 = vmatprep.subr.bf16.mxu0 0
    %216 = vmatpush1.bf16.msra.mxu0 0
    %217 = vmatprep.subr.bf16.mxu0 %v162
    %218 = vmatpush1.bf16.msra.mxu0 %v159
    %219 = vmatprep.subr.bf16.mxu0 %v136
    %220 = vmatpush1.bf16.msra.mxu0 %v135
    %221 = vmatprep.subr.bf16.mxu0 0
    %222 = vmatpush2.bf16.msra.mxu0 0
    %223 = vmatprep.subr.bf16.mxu0 0
    %224 = vmatpush2.bf16.msra.mxu0 0
    %225 = vmatprep.subr.bf16.mxu0 0
    %226 = vmatpush2.bf16.msra.mxu0 0
    %227 = vmatprep.subr.bf16.mxu0 0
    %228 = vmatpush2.bf16.msra.mxu0 0
    %229 = vmatprep.subr.bf16.mxu0 0
    %230 = vmatpush2.bf16.msra.mxu0 0
    %231 = vmatprep.subr.bf16.mxu0 0
    %232 = vmatpush2.bf16.msra.mxu0 0
    %233 = vmatprep.subr.bf16.mxu0 0
    %234 = vmatpush2.bf16.msra.mxu0 0
    %235 = vmatprep.subr.bf16.mxu0 0
    %236 = vmatpush2.bf16.msra.mxu0 0
    %237 = vmatprep.mubr.bf16.mxu0 0
    %238 = vmatmul.mubr.bf16.gmra.mxu0 %v147
    %v239 = vpop.f32.mrf.mxu0
    %v240 = vadd.f32 %v106, %v239
    %v241 = vpop.f32.mrf.mxu0
    %v242 = vadd.f32 %v110, %v241
    %v243 = vpop.f32.mrf.mxu0
    %v244 = vpop.f32.mrf.mxu0
    %245 = vdwg.mxu0
    %v246 = vmax.f32 %v199, 0.0
    %v247 = vmax.f32 %v201, 0.0
    %v248 = vmax.f32 %v240, 0.0
    %v249 = vmax.f32 %v242, 0.0
    %v250 = vpack.c.bf16 %v246, %v246
    %v251 = vpack.c.bf16 %v247, %v247
    %v252 = vpack.c.bf16 %v248, %v248
    %v253 = vpack.c.bf16 %v249, %v249
    %v254 = vld [vmem:[#allocation8] sm:$0xff]
    %v255 = vld [vmem:[#allocation8 + $0x8] sm:$0xf]
    %v256 = vld [vmem:[#allocation8 + $0xc] sm:$0xff]
    %v257 = vld [vmem:[#allocation8 + $0x14] sm:$0xf]
    %v258 = vld [vmem:[#allocation8 + $0x18] sm:$0xff]
    %v259 = vld [vmem:[#allocation8 + $0x20] sm:$0xf]
    %v260 = vld [vmem:[#allocation8 + $0x24] sm:$0xff]
    %v261 = vld [vmem:[#allocation8 + $0x2c] sm:$0xf]
    %v262 = vld [vmem:[#allocation8 + $0x30] sm:$0xff]
    %v263 = vld [vmem:[#allocation8 + $0x38] sm:$0xf]
    %v264 = vld [vmem:[#allocation8 + $0x3c] sm:$0xff]
    %v265 = vld [vmem:[#allocation8 + $0x44] sm:$0xf]
    %v266 = vld [vmem:[#allocation8 + $0x48] sm:$0xff]
    %v267 = vld [vmem:[#allocation8 + $0x50] sm:$0xf]
    %v268 = vld [vmem:[#allocation8 + $0x54] sm:$0xff]
    %v269 = vld [vmem:[#allocation8 + $0x5c] sm:$0xf]
    %v270 = vld [vmem:[#allocation8 + $0x60] sm:$0xff]
    %v271 = vld [vmem:[#allocation8 + $0x68] sm:$0xf]
    %v272 = vld [vmem:[#allocation8 + $0x6c] sm:$0xff]
    %v273 = vld [vmem:[#allocation8 + $0x74] sm:$0xf]
    %v274 = vld [vmem:[#allocation8 + $0x78] sm:$0xff]
    %v275 = vld [vmem:[#allocation8 + $0x80] sm:$0xf]
    %v276 = vld [vmem:[#allocation8 + $0x84] sm:$0xff]
    %v277 = vld [vmem:[#allocation8 + $0x8c] sm:$0xf]
    %v278 = vld [vmem:[#allocation8 + $0x90] sm:$0xff]
    %v279 = vld [vmem:[#allocation8 + $0x98] sm:$0xf]
    %v280 = vld [vmem:[#allocation8 + $0x9c] sm:$0xff]
    %v281 = vld [vmem:[#allocation8 + $0xa4] sm:$0xf]
    %v282 = vld [vmem:[#allocation8 + $0xa8] sm:$0xff]
    %v283 = vld [vmem:[#allocation8 + $0xb0] sm:$0xf]
    %v284 = vld [vmem:[#allocation8 + $0xb4] sm:$0xff]
    %v285 = vld [vmem:[#allocation8 + $0xbc] sm:$0xf]
    %v286 = vld [vmem:[#allocation8 + $0xc0] sm:$0xff]
    %v287 = vld [vmem:[#allocation8 + $0xc8] sm:$0xf]
    %v288 = vld [vmem:[#allocation8 + $0xcc] sm:$0xff]
    %v289 = vld [vmem:[#allocation8 + $0xd4] sm:$0xf]
    %v290 = vld [vmem:[#allocation8 + $0xd8] sm:$0xff]
    %v291 = vld [vmem:[#allocation8 + $0xe0] sm:$0xf]
    %v292 = vld [vmem:[#allocation8 + $0xe4] sm:$0xff]
    %v293 = vld [vmem:[#allocation8 + $0xec] sm:$0xf]
    %v294 = vld [vmem:[#allocation8 + $0xf0] sm:$0xff]
    %v295 = vld [vmem:[#allocation8 + $0xf8] sm:$0xf]
    %v296 = vld [vmem:[#allocation8 + $0xfc] sm:$0xff]
    %v297 = vld [vmem:[#allocation8 + $0x104] sm:$0xf]
    %v298 = vld [vmem:[#allocation8 + $0x108] sm:$0xff]
    %v299 = vld [vmem:[#allocation8 + $0x110] sm:$0xf]
    %v300 = vld [vmem:[#allocation8 + $0x114] sm:$0xff]
    %v301 = vld [vmem:[#allocation8 + $0x11c] sm:$0xf]
    %v302 = vld [vmem:[#allocation8 + $0x120] sm:$0xff]
    %v303 = vld [vmem:[#allocation8 + $0x128] sm:$0xf]
    %v304 = vld [vmem:[#allocation8 + $0x12c] sm:$0xff]
    %v305 = vld [vmem:[#allocation8 + $0x134] sm:$0xf]
    %v306 = vld [vmem:[#allocation8 + $0x138] sm:$0xff]
    %v307 = vld [vmem:[#allocation8 + $0x140] sm:$0xf]
    %v308 = vld [vmem:[#allocation8 + $0x144] sm:$0xff]
    %v309 = vld [vmem:[#allocation8 + $0x14c] sm:$0xf]
    %v310 = vld [vmem:[#allocation8 + $0x150] sm:$0xff]
    %v311 = vld [vmem:[#allocation8 + $0x158] sm:$0xf]
    %v312 = vld [vmem:[#allocation8 + $0x15c] sm:$0xff]
    %v313 = vld [vmem:[#allocation8 + $0x164] sm:$0xf]
    %v314 = vld [vmem:[#allocation8 + $0x168] sm:$0xff]
    %v315 = vld [vmem:[#allocation8 + $0x170] sm:$0xf]
    %v316 = vld [vmem:[#allocation8 + $0x174] sm:$0xff]
    %v317 = vld [vmem:[#allocation8 + $0x17c] sm:$0xf]
    %v318 = vld [vmem:[#allocation8 + $0x180] sm:$0xff]
    %v319 = vld [vmem:[#allocation8 + $0x188] sm:$0xf]
    %v320 = vld [vmem:[#allocation8 + $0x18c] sm:$0xff]
    %v321 = vld [vmem:[#allocation8 + $0x194] sm:$0xf]
    %v322 = vld [vmem:[#allocation8 + $0x198] sm:$0xff]
    %v323 = vld [vmem:[#allocation8 + $0x1a0] sm:$0xf]
    %v324 = vld [vmem:[#allocation8 + $0x1a4] sm:$0xff]
    %v325 = vld [vmem:[#allocation8 + $0x1ac] sm:$0xf]
    %v326 = vld [vmem:[#allocation8 + $0x1b0] sm:$0xff]
    %v327 = vld [vmem:[#allocation8 + $0x1b8] sm:$0xf]
    %v328 = vld [vmem:[#allocation8 + $0x1bc] sm:$0xff]
    %v329 = vld [vmem:[#allocation8 + $0x1c4] sm:$0xf]
    %v330 = vld [vmem:[#allocation8 + $0x1c8] sm:$0xff]
    %v331 = vld [vmem:[#allocation8 + $0x1d0] sm:$0xf]
    %v332 = vld [vmem:[#allocation8 + $0x1d4] sm:$0xff]
    %v333 = vld [vmem:[#allocation8 + $0x1dc] sm:$0xf]
    %v334 = vld [vmem:[#allocation8 + $0x1e0] sm:$0xff]
    %v335 = vld [vmem:[#allocation8 + $0x1e8] sm:$0xf]
    %v336 = vld [vmem:[#allocation8 + $0x1ec] sm:$0xff]
    %v337 = vld [vmem:[#allocation8 + $0x1f4] sm:$0xf]
    %v338 = vld [vmem:[#allocation8 + $0x1f8] sm:$0xff]
    %v339 = vld [vmem:[#allocation8 + $0x200] sm:$0xf]
    %v340 = vld [vmem:[#allocation8 + $0x204] sm:$0xff]
    %v341 = vld [vmem:[#allocation8 + $0x20c] sm:$0xf]
    %v342 = vld [vmem:[#allocation8 + $0x210] sm:$0xff]
    %v343 = vld [vmem:[#allocation8 + $0x218] sm:$0xf]
    %v344 = vld [vmem:[#allocation8 + $0x21c] sm:$0xff]
    %v345 = vld [vmem:[#allocation8 + $0x224] sm:$0xf]
    %v346 = vld [vmem:[#allocation8 + $0x228] sm:$0xff]
    %v347 = vld [vmem:[#allocation8 + $0x230] sm:$0xf]
    %v348 = vld [vmem:[#allocation8 + $0x234] sm:$0xff]
    %v349 = vld [vmem:[#allocation8 + $0x23c] sm:$0xf]
    %v350 = vld [vmem:[#allocation8 + $0x240] sm:$0xff]
    %v351 = vld [vmem:[#allocation8 + $0x248] sm:$0xf]
    %v352 = vld [vmem:[#allocation8 + $0x24c] sm:$0xff]
    %v353 = vld [vmem:[#allocation8 + $0x254] sm:$0xf]
    %v354 = vld [vmem:[#allocation8 + $0x258] sm:$0xff]
    %v355 = vld [vmem:[#allocation8 + $0x260] sm:$0xf]
    %v356 = vld [vmem:[#allocation8 + $0x264] sm:$0xff]
    %v357 = vld [vmem:[#allocation8 + $0x26c] sm:$0xf]
    %v358 = vld [vmem:[#allocation8 + $0x270] sm:$0xff]
    %v359 = vld [vmem:[#allocation8 + $0x278] sm:$0xf]
    %v360 = vld [vmem:[#allocation8 + $0x27c] sm:$0xff]
    %v361 = vld [vmem:[#allocation8 + $0x284] sm:$0xf]
    %v362 = vld [vmem:[#allocation8 + $0x288] sm:$0xff]
    %v363 = vld [vmem:[#allocation8 + $0x290] sm:$0xf]
    %v364 = vld [vmem:[#allocation8 + $0x294] sm:$0xff]
    %v365 = vld [vmem:[#allocation8 + $0x29c] sm:$0xf]
    %v366 = vld [vmem:[#allocation8 + $0x2a0] sm:$0xff]
    %v367 = vld [vmem:[#allocation8 + $0x2a8] sm:$0xf]
    %v368 = vld [vmem:[#allocation8 + $0x2ac] sm:$0xff]
    %v369 = vld [vmem:[#allocation8 + $0x2b4] sm:$0xf]
    %v370 = vld [vmem:[#allocation8 + $0x2b8] sm:$0xff]
    %v371 = vld [vmem:[#allocation8 + $0x2c0] sm:$0xf]
    %v372 = vld [vmem:[#allocation8 + $0x2c4] sm:$0xff]
    %v373 = vld [vmem:[#allocation8 + $0x2cc] sm:$0xf]
    %v374 = vld [vmem:[#allocation8 + $0x2d0] sm:$0xff]
    %v375 = vld [vmem:[#allocation8 + $0x2d8] sm:$0xf]
    %v376 = vld [vmem:[#allocation8 + $0x2dc] sm:$0xff]
    %v377 = vld [vmem:[#allocation8 + $0x2e4] sm:$0xf]
    %v378 = vld [vmem:[#allocation8 + $0x2e8] sm:$0xff]
    %v379 = vld [vmem:[#allocation8 + $0x2f0] sm:$0xf]
    %v380 = vld [vmem:[#allocation8 + $0x2f4] sm:$0xff]
    %v381 = vld [vmem:[#allocation8 + $0x2fc] sm:$0xf]
    %v382 = vld [vmem:[%s5] sm:$0x7]
    %v384 = vlaneseq
    %v385 = vshrl.u32 %v384, 7
    %v386 = vsub.s32 0, %v385
    %v387 = vrot.slane %v382, %v386
    %v388 = vlaneseq
    %v389 = vshrl.u32 %v388, 7
    %v390 = vsub.s32 1, %v389
    %v391 = vrot.slane %v382, %v390
    %v392 = vlaneseq
    %v393 = vshrl.u32 %v392, 7
    %v394 = vsub.s32 2, %v393
    %v395 = vrot.slane %v382, %v394
    %v527 = vunpack.c.l.b16 %v254
    %v528 = vunpack.c.h.b16 %v254
    %v529 = vunpack.c.l.b16 %v255
    %v530 = vunpack.c.l.b16 %v256
    %v531 = vunpack.c.h.b16 %v256
    %v532 = vunpack.c.l.b16 %v257
    %v533 = vunpack.c.l.b16 %v258
    %v534 = vunpack.c.h.b16 %v258
    %v535 = vunpack.c.l.b16 %v259
    %v536 = vunpack.c.l.b16 %v260
    %v537 = vunpack.c.h.b16 %v260
    %v538 = vunpack.c.l.b16 %v261
    %v539 = vunpack.c.l.b16 %v262
    %v540 = vunpack.c.h.b16 %v262
    %v541 = vunpack.c.l.b16 %v263
    %v542 = vunpack.c.l.b16 %v264
    %v543 = vunpack.c.h.b16 %v264
    %v544 = vunpack.c.l.b16 %v265
    %v545 = vunpack.c.l.b16 %v266
    %v546 = vunpack.c.h.b16 %v266
    %v547 = vunpack.c.l.b16 %v267
    %v548 = vunpack.c.l.b16 %v268
    %v549 = vunpack.c.h.b16 %v268
    %v550 = vunpack.c.l.b16 %v269
    %v551 = vunpack.c.l.b16 %v270
    %v552 = vunpack.c.h.b16 %v270
    %v553 = vunpack.c.l.b16 %v271
    %v554 = vunpack.c.l.b16 %v272
    %v555 = vunpack.c.h.b16 %v272
    %v556 = vunpack.c.l.b16 %v273
    %v557 = vunpack.c.l.b16 %v274
    %v558 = vunpack.c.h.b16 %v274
    %v559 = vunpack.c.l.b16 %v275
    %v560 = vunpack.c.l.b16 %v276
    %v561 = vunpack.c.h.b16 %v276
    %v562 = vunpack.c.l.b16 %v277
    %v563 = vunpack.c.l.b16 %v278
    %v564 = vunpack.c.h.b16 %v278
    %v565 = vunpack.c.l.b16 %v279
    %v566 = vunpack.c.l.b16 %v280
    %v567 = vunpack.c.h.b16 %v280
    %v568 = vunpack.c.l.b16 %v281
    %v569 = vunpack.c.l.b16 %v282
    %v570 = vunpack.c.h.b16 %v282
    %v571 = vunpack.c.l.b16 %v283
    %v572 = vunpack.c.l.b16 %v284
    %v573 = vunpack.c.h.b16 %v284
    %v574 = vunpack.c.l.b16 %v285
    %v575 = vunpack.c.l.b16 %v286
    %v576 = vunpack.c.h.b16 %v286
    %v577 = vunpack.c.l.b16 %v287
    %v578 = vunpack.c.l.b16 %v288
    %v579 = vunpack.c.h.b16 %v288
    %v580 = vunpack.c.l.b16 %v289
    %v581 = vunpack.c.l.b16 %v290
    %v582 = vunpack.c.h.b16 %v290
    %v583 = vunpack.c.l.b16 %v291
    %v584 = vunpack.c.l.b16 %v292
    %v585 = vunpack.c.h.b16 %v292
    %v586 = vunpack.c.l.b16 %v293
    %v587 = vunpack.c.l.b16 %v294
    %v588 = vunpack.c.h.b16 %v294
    %v589 = vunpack.c.l.b16 %v295
    %v590 = vunpack.c.l.b16 %v296
    %v591 = vunpack.c.h.b16 %v296
    %v592 = vunpack.c.l.b16 %v297
    %v593 = vunpack.c.l.b16 %v298
    %v594 = vunpack.c.h.b16 %v298
    %v595 = vunpack.c.l.b16 %v299
    %v596 = vunpack.c.l.b16 %v300
    %v597 = vunpack.c.h.b16 %v300
    %v598 = vunpack.c.l.b16 %v301
    %v599 = vunpack.c.l.b16 %v302
    %v600 = vunpack.c.h.b16 %v302
    %v601 = vunpack.c.l.b16 %v303
    %v602 = vunpack.c.l.b16 %v304
    %v603 = vunpack.c.h.b16 %v304
    %v604 = vunpack.c.l.b16 %v305
    %v605 = vunpack.c.l.b16 %v306
    %v606 = vunpack.c.h.b16 %v306
    %v607 = vunpack.c.l.b16 %v307
    %v608 = vunpack.c.l.b16 %v308
    %v609 = vunpack.c.h.b16 %v308
    %v610 = vunpack.c.l.b16 %v309
    %v611 = vunpack.c.l.b16 %v310
    %v612 = vunpack.c.h.b16 %v310
    %v613 = vunpack.c.l.b16 %v311
    %v614 = vunpack.c.l.b16 %v312
    %v615 = vunpack.c.h.b16 %v312
    %v616 = vunpack.c.l.b16 %v313
    %v617 = vunpack.c.l.b16 %v314
    %v618 = vunpack.c.h.b16 %v314
    %v619 = vunpack.c.l.b16 %v315
    %v620 = vunpack.c.l.b16 %v316
    %v621 = vunpack.c.h.b16 %v316
    %v622 = vunpack.c.l.b16 %v317
    %v623 = vunpack.c.l.b16 %v318
    %v624 = vunpack.c.h.b16 %v318
    %v625 = vunpack.c.l.b16 %v319
    %v626 = vunpack.c.l.b16 %v320
    %v627 = vunpack.c.h.b16 %v320
    %v628 = vunpack.c.l.b16 %v321
    %v629 = vunpack.c.l.b16 %v322
    %v630 = vunpack.c.h.b16 %v322
    %v631 = vunpack.c.l.b16 %v323
    %v632 = vunpack.c.l.b16 %v324
    %v633 = vunpack.c.h.b16 %v324
    %v634 = vunpack.c.l.b16 %v325
    %v635 = vunpack.c.l.b16 %v326
    %v636 = vunpack.c.h.b16 %v326
    %v637 = vunpack.c.l.b16 %v327
    %v638 = vunpack.c.l.b16 %v328
    %v639 = vunpack.c.h.b16 %v328
    %v640 = vunpack.c.l.b16 %v329
    %v641 = vunpack.c.l.b16 %v330
    %v642 = vunpack.c.h.b16 %v330
    %v643 = vunpack.c.l.b16 %v331
    %v644 = vunpack.c.l.b16 %v332
    %v645 = vunpack.c.h.b16 %v332
    %v646 = vunpack.c.l.b16 %v333
    %v647 = vunpack.c.l.b16 %v334
    %v648 = vunpack.c.h.b16 %v334
    %v649 = vunpack.c.l.b16 %v335
    %v650 = vunpack.c.l.b16 %v336
    %v651 = vunpack.c.h.b16 %v336
    %v652 = vunpack.c.l.b16 %v337
    %v653 = vunpack.c.l.b16 %v338
    %v654 = vunpack.c.h.b16 %v338
    %v655 = vunpack.c.l.b16 %v339
    %v656 = vunpack.c.l.b16 %v340
    %v657 = vunpack.c.h.b16 %v340
    %v658 = vunpack.c.l.b16 %v341
    %v659 = vunpack.c.l.b16 %v342
    %v660 = vunpack.c.h.b16 %v342
    %v661 = vunpack.c.l.b16 %v343
    %v662 = vunpack.c.l.b16 %v344
    %v663 = vunpack.c.h.b16 %v344
    %v664 = vunpack.c.l.b16 %v345
    %v665 = vunpack.c.l.b16 %v346
    %v666 = vunpack.c.h.b16 %v346
    %v667 = vunpack.c.l.b16 %v347
    %v668 = vunpack.c.l.b16 %v348
    %v669 = vunpack.c.h.b16 %v348
    %v670 = vunpack.c.l.b16 %v349
    %v671 = vunpack.c.l.b16 %v350
    %v672 = vunpack.c.h.b16 %v350
    %v673 = vunpack.c.l.b16 %v351
    %v674 = vunpack.c.l.b16 %v352
    %v675 = vunpack.c.h.b16 %v352
    %v676 = vunpack.c.l.b16 %v353
    %v677 = vunpack.c.l.b16 %v354
    %v678 = vunpack.c.h.b16 %v354
    %v679 = vunpack.c.l.b16 %v355
    %v680 = vunpack.c.l.b16 %v356
    %v681 = vunpack.c.h.b16 %v356
    %v682 = vunpack.c.l.b16 %v357
    %v683 = vunpack.c.l.b16 %v358
    %v684 = vunpack.c.h.b16 %v358
    %v685 = vunpack.c.l.b16 %v359
    %v686 = vunpack.c.l.b16 %v360
    %v687 = vunpack.c.h.b16 %v360
    %v688 = vunpack.c.l.b16 %v361
    %v689 = vunpack.c.l.b16 %v362
    %v690 = vunpack.c.h.b16 %v362
    %v691 = vunpack.c.l.b16 %v363
    %v692 = vunpack.c.l.b16 %v364
    %v693 = vunpack.c.h.b16 %v364
    %v694 = vunpack.c.l.b16 %v365
    %v695 = vunpack.c.l.b16 %v366
    %v696 = vunpack.c.h.b16 %v366
    %v697 = vunpack.c.l.b16 %v367
    %v698 = vunpack.c.l.b16 %v368
    %v699 = vunpack.c.h.b16 %v368
    %v700 = vunpack.c.l.b16 %v369
    %v701 = vunpack.c.l.b16 %v370
    %v702 = vunpack.c.h.b16 %v370
    %v703 = vunpack.c.l.b16 %v371
    %v704 = vunpack.c.l.b16 %v372
    %v705 = vunpack.c.h.b16 %v372
    %v706 = vunpack.c.l.b16 %v373
    %v707 = vunpack.c.l.b16 %v374
    %v708 = vunpack.c.h.b16 %v374
    %v709 = vunpack.c.l.b16 %v375
    %v710 = vunpack.c.l.b16 %v376
    %v711 = vunpack.c.h.b16 %v376
    %v712 = vunpack.c.l.b16 %v377
    %v713 = vunpack.c.l.b16 %v378
    %v714 = vunpack.c.h.b16 %v378
    %v715 = vunpack.c.l.b16 %v379
    %v716 = vunpack.c.l.b16 %v380
    %v717 = vunpack.c.h.b16 %v380
    %v718 = vunpack.c.l.b16 %v381
    %v719 = vpack.c.b16 %v530, %v527
    %v720 = vpack.c.b16 %v531, %v528
    %v721 = vpack.c.b16 %v532, %v529
    %v722 = vpack.c.b16 %v536, %v533
    %v723 = vpack.c.b16 %v537, %v534
    %v724 = vpack.c.b16 %v538, %v535
    %v725 = vpack.c.b16 %v542, %v539
    %v726 = vpack.c.b16 %v543, %v540
    %v727 = vpack.c.b16 %v544, %v541
    %v728 = vpack.c.b16 %v548, %v545
    %v729 = vpack.c.b16 %v549, %v546
    %v730 = vpack.c.b16 %v550, %v547
    %v731 = vpack.c.b16 %v554, %v551
    %v732 = vpack.c.b16 %v555, %v552
    %v733 = vpack.c.b16 %v556, %v553
    %v734 = vpack.c.b16 %v560, %v557
    %v735 = vpack.c.b16 %v561, %v558
    %v736 = vpack.c.b16 %v562, %v559
    %v737 = vpack.c.b16 %v566, %v563
    %v738 = vpack.c.b16 %v567, %v564
    %v739 = vpack.c.b16 %v568, %v565
    %v740 = vpack.c.b16 %v572, %v569
    %v741 = vpack.c.b16 %v573, %v570
    %v742 = vpack.c.b16 %v574, %v571
    %v743 = vpack.c.b16 %v578, %v575
    %v744 = vpack.c.b16 %v579, %v576
    %v745 = vpack.c.b16 %v580, %v577
    %v746 = vpack.c.b16 %v584, %v581
    %v747 = vpack.c.b16 %v585, %v582
    %v748 = vpack.c.b16 %v586, %v583
    %v749 = vpack.c.b16 %v590, %v587
    %v750 = vpack.c.b16 %v591, %v588
    %v751 = vpack.c.b16 %v592, %v589
    %v752 = vpack.c.b16 %v596, %v593
    %v753 = vpack.c.b16 %v597, %v594
    %v754 = vpack.c.b16 %v598, %v595
    %v755 = vpack.c.b16 %v602, %v599
    %v756 = vpack.c.b16 %v603, %v600
    %v757 = vpack.c.b16 %v604, %v601
    %v758 = vpack.c.b16 %v608, %v605
    %v759 = vpack.c.b16 %v609, %v606
    %v760 = vpack.c.b16 %v610, %v607
    %v761 = vpack.c.b16 %v614, %v611
    %v762 = vpack.c.b16 %v615, %v612
    %v763 = vpack.c.b16 %v616, %v613
    %v764 = vpack.c.b16 %v620, %v617
    %v765 = vpack.c.b16 %v621, %v618
    %v766 = vpack.c.b16 %v622, %v619
    %v767 = vpack.c.b16 %v626, %v623
    %v768 = vpack.c.b16 %v627, %v624
    %v769 = vpack.c.b16 %v628, %v625
    %v770 = vpack.c.b16 %v632, %v629
    %v771 = vpack.c.b16 %v633, %v630
    %v772 = vpack.c.b16 %v634, %v631
    %v773 = vpack.c.b16 %v638, %v635
    %v774 = vpack.c.b16 %v639, %v636
    %v775 = vpack.c.b16 %v640, %v637
    %v776 = vpack.c.b16 %v644, %v641
    %v777 = vpack.c.b16 %v645, %v642
    %v778 = vpack.c.b16 %v646, %v643
    %v779 = vpack.c.b16 %v650, %v647
    %v780 = vpack.c.b16 %v651, %v648
    %v781 = vpack.c.b16 %v652, %v649
    %v782 = vpack.c.b16 %v656, %v653
    %v783 = vpack.c.b16 %v657, %v654
    %v784 = vpack.c.b16 %v658, %v655
    %v785 = vpack.c.b16 %v662, %v659
    %v786 = vpack.c.b16 %v663, %v660
    %v787 = vpack.c.b16 %v664, %v661
    %v788 = vpack.c.b16 %v668, %v665
    %v789 = vpack.c.b16 %v669, %v666
    %v790 = vpack.c.b16 %v670, %v667
    %v791 = vpack.c.b16 %v674, %v671
    %v792 = vpack.c.b16 %v675, %v672
    %v793 = vpack.c.b16 %v676, %v673
    %v794 = vpack.c.b16 %v680, %v677
    %v795 = vpack.c.b16 %v681, %v678
    %v796 = vpack.c.b16 %v682, %v679
    %v797 = vpack.c.b16 %v686, %v683
    %v798 = vpack.c.b16 %v687, %v684
    %v799 = vpack.c.b16 %v688, %v685
    %v800 = vpack.c.b16 %v692, %v689
    %v801 = vpack.c.b16 %v693, %v690
    %v802 = vpack.c.b16 %v694, %v691
    %v803 = vpack.c.b16 %v698, %v695
    %v804 = vpack.c.b16 %v699, %v696
    %v805 = vpack.c.b16 %v700, %v697
    %v806 = vpack.c.b16 %v704, %v701
    %v807 = vpack.c.b16 %v705, %v702
    %v808 = vpack.c.b16 %v706, %v703
    %v809 = vpack.c.b16 %v710, %v707
    %v810 = vpack.c.b16 %v711, %v708
    %v811 = vpack.c.b16 %v712, %v709
    %v812 = vpack.c.b16 %v716, %v713
    %v813 = vpack.c.b16 %v717, %v714
    %v814 = vpack.c.b16 %v718, %v715
    %911 = vmatprep.subr.bf16.mxu0 %v741
    %912 = vmatpush1.bf16.msra.mxu0 %v740
    %913 = vmatprep.subr.bf16.mxu0 %v738
    %914 = vmatpush1.bf16.msra.mxu0 %v737
    %915 = vmatprep.subr.bf16.mxu0 %v735
    %916 = vmatpush1.bf16.msra.mxu0 %v734
    %917 = vmatprep.subr.bf16.mxu0 %v732
    %918 = vmatpush1.bf16.msra.mxu0 %v731
    %919 = vmatprep.subr.bf16.mxu0 %v729
    %920 = vmatpush1.bf16.msra.mxu0 %v728
    %921 = vmatprep.subr.bf16.mxu0 %v726
    %922 = vmatpush1.bf16.msra.mxu0 %v725
    %923 = vmatprep.subr.bf16.mxu0 %v723
    %924 = vmatpush1.bf16.msra.mxu0 %v722
    %925 = vmatprep.subr.bf16.mxu0 %v720
    %926 = vmatpush1.bf16.msra.mxu0 %v719
    %927 = vmatprep.subr.bf16.mxu0 %v765
    %928 = vmatpush2.bf16.msra.mxu0 %v764
    %929 = vmatprep.subr.bf16.mxu0 %v762
    %930 = vmatpush2.bf16.msra.mxu0 %v761
    %931 = vmatprep.subr.bf16.mxu0 %v759
    %932 = vmatpush2.bf16.msra.mxu0 %v758
    %933 = vmatprep.subr.bf16.mxu0 %v756
    %934 = vmatpush2.bf16.msra.mxu0 %v755
    %935 = vmatprep.subr.bf16.mxu0 %v753
    %936 = vmatpush2.bf16.msra.mxu0 %v752
    %937 = vmatprep.subr.bf16.mxu0 %v750
    %938 = vmatpush2.bf16.msra.mxu0 %v749
    %939 = vmatprep.subr.bf16.mxu0 %v747
    %940 = vmatpush2.bf16.msra.mxu0 %v746
    %941 = vmatprep.subr.bf16.mxu0 %v744
    %942 = vmatpush2.bf16.msra.mxu0 %v743
    %943 = vmatprep.mubr.bf16.mxu0 %v251
    %944 = vmatmul.mubr.bf16.gmra.mxu0 %v250
    %v945 = vpop.f32.mrf.mxu0
    %v946 = vadd.f32 %v387, %v945
    %v947 = vpop.f32.mrf.mxu0
    %v948 = vadd.f32 %v391, %v947
    %v949 = vpop.f32.mrf.mxu0
    %v950 = vpop.f32.mrf.mxu0
    %951 = vdwg.mxu0
    %952 = vmatprep.subr.bf16.mxu0 %v789
    %953 = vmatpush1.bf16.msra.mxu0 %v788
    %954 = vmatprep.subr.bf16.mxu0 %v786
    %955 = vmatpush1.bf16.msra.mxu0 %v785
    %956 = vmatprep.subr.bf16.mxu0 %v783
    %957 = vmatpush1.bf16.msra.mxu0 %v782
    %958 = vmatprep.subr.bf16.mxu0 %v780
    %959 = vmatpush1.bf16.msra.mxu0 %v779
    %960 = vmatprep.subr.bf16.mxu0 %v777
    %961 = vmatpush1.bf16.msra.mxu0 %v776
    %962 = vmatprep.subr.bf16.mxu0 %v774
    %963 = vmatpush1.bf16.msra.mxu0 %v773
    %964 = vmatprep.subr.bf16.mxu0 %v771
    %965 = vmatpush1.bf16.msra.mxu0 %v770
    %966 = vmatprep.subr.bf16.mxu0 %v768
    %967 = vmatpush1.bf16.msra.mxu0 %v767
    %968 = vmatprep.subr.bf16.mxu0 %v813
    %969 = vmatpush2.bf16.msra.mxu0 %v812
    %970 = vmatprep.subr.bf16.mxu0 %v810
    %971 = vmatpush2.bf16.msra.mxu0 %v809
    %972 = vmatprep.subr.bf16.mxu0 %v807
    %973 = vmatpush2.bf16.msra.mxu0 %v806
    %974 = vmatprep.subr.bf16.mxu0 %v804
    %975 = vmatpush2.bf16.msra.mxu0 %v803
    %976 = vmatprep.subr.bf16.mxu0 %v801
    %977 = vmatpush2.bf16.msra.mxu0 %v800
    %978 = vmatprep.subr.bf16.mxu0 %v798
    %979 = vmatpush2.bf16.msra.mxu0 %v797
    %980 = vmatprep.subr.bf16.mxu0 %v795
    %981 = vmatpush2.bf16.msra.mxu0 %v794
    %982 = vmatprep.subr.bf16.mxu0 %v792
    %983 = vmatpush2.bf16.msra.mxu0 %v791
    %984 = vmatprep.mubr.bf16.mxu0 %v253
    %985 = vmatmul.mubr.bf16.gmra.mxu0 %v252
    %v986 = vpop.f32.mrf.mxu0
    %v987 = vadd.f32 %v946, %v986
    %v988 = vpop.f32.mrf.mxu0
    %v989 = vadd.f32 %v948, %v988
    %v990 = vpop.f32.mrf.mxu0
    %v991 = vpop.f32.mrf.mxu0
    %992 = vdwg.mxu0
    %993 = vmatprep.subr.bf16.mxu0 0
    %994 = vmatpush1.bf16.msra.mxu0 %v742
    %995 = vmatprep.subr.bf16.mxu0 0
    %996 = vmatpush1.bf16.msra.mxu0 %v739
    %997 = vmatprep.subr.bf16.mxu0 0
    %998 = vmatpush1.bf16.msra.mxu0 %v736
    %999 = vmatprep.subr.bf16.mxu0 0
    %1000 = vmatpush1.bf16.msra.mxu0 %v733
    %1001 = vmatprep.subr.bf16.mxu0 0
    %1002 = vmatpush1.bf16.msra.mxu0 %v730
    %1003 = vmatprep.subr.bf16.mxu0 0
    %1004 = vmatpush1.bf16.msra.mxu0 %v727
    %1005 = vmatprep.subr.bf16.mxu0 0
    %1006 = vmatpush1.bf16.msra.mxu0 %v724
    %1007 = vmatprep.subr.bf16.mxu0 0
    %1008 = vmatpush1.bf16.msra.mxu0 %v721
    %1009 = vmatprep.subr.bf16.mxu0 0
    %1010 = vmatpush2.bf16.msra.mxu0 %v766
    %1011 = vmatprep.subr.bf16.mxu0 0
    %1012 = vmatpush2.bf16.msra.mxu0 %v763
    %1013 = vmatprep.subr.bf16.mxu0 0
    %1014 = vmatpush2.bf16.msra.mxu0 %v760
    %1015 = vmatprep.subr.bf16.mxu0 0
    %1016 = vmatpush2.bf16.msra.mxu0 %v757
    %1017 = vmatprep.subr.bf16.mxu0 0
    %1018 = vmatpush2.bf16.msra.mxu0 %v754
    %1019 = vmatprep.subr.bf16.mxu0 0
    %1020 = vmatpush2.bf16.msra.mxu0 %v751
    %1021 = vmatprep.subr.bf16.mxu0 0
    %1022 = vmatpush2.bf16.msra.mxu0 %v748
    %1023 = vmatprep.subr.bf16.mxu0 0
    %1024 = vmatpush2.bf16.msra.mxu0 %v745
    %1025 = vmatprep.mubr.bf16.mxu0 %v251
    %1026 = vmatmul.mubr.bf16.gmra.mxu0 %v250
    %v1027 = vpop.f32.mrf.mxu0
    %v1028 = vadd.f32 %v395, %v1027
    %v1029 = vpop.f32.mrf.mxu0
    %v1030 = vpop.f32.mrf.mxu0
    %v1031 = vpop.f32.mrf.mxu0
    %1032 = vdwg.mxu0
    %1033 = vmatprep.subr.bf16.mxu0 0
    %1034 = vmatpush1.bf16.msra.mxu0 %v790
    %1035 = vmatprep.subr.bf16.mxu0 0
    %1036 = vmatpush1.bf16.msra.mxu0 %v787
    %1037 = vmatprep.subr.bf16.mxu0 0
    %1038 = vmatpush1.bf16.msra.mxu0 %v784
    %1039 = vmatprep.subr.bf16.mxu0 0
    %1040 = vmatpush1.bf16.msra.mxu0 %v781
    %1041 = vmatprep.subr.bf16.mxu0 0
    %1042 = vmatpush1.bf16.msra.mxu0 %v778
    %1043 = vmatprep.subr.bf16.mxu0 0
    %1044 = vmatpush1.bf16.msra.mxu0 %v775
    %1045 = vmatprep.subr.bf16.mxu0 0
    %1046 = vmatpush1.bf16.msra.mxu0 %v772
    %1047 = vmatprep.subr.bf16.mxu0 0
    %1048 = vmatpush1.bf16.msra.mxu0 %v769
    %1049 = vmatprep.subr.bf16.mxu0 0
    %1050 = vmatpush2.bf16.msra.mxu0 %v814
    %1051 = vmatprep.subr.bf16.mxu0 0
    %1052 = vmatpush2.bf16.msra.mxu0 %v811
    %1053 = vmatprep.subr.bf16.mxu0 0
    %1054 = vmatpush2.bf16.msra.mxu0 %v808
    %1055 = vmatprep.subr.bf16.mxu0 0
    %1056 = vmatpush2.bf16.msra.mxu0 %v805
    %1057 = vmatprep.subr.bf16.mxu0 0
    %1058 = vmatpush2.bf16.msra.mxu0 %v802
    %1059 = vmatprep.subr.bf16.mxu0 0
    %1060 = vmatpush2.bf16.msra.mxu0 %v799
    %1061 = vmatprep.subr.bf16.mxu0 0
    %1062 = vmatpush2.bf16.msra.mxu0 %v796
    %1063 = vmatprep.subr.bf16.mxu0 0
    %1064 = vmatpush2.bf16.msra.mxu0 %v793
    %1065 = vmatprep.mubr.bf16.mxu0 %v253
    %1066 = vmatmul.mubr.bf16.gmra.mxu0 %v252
    %v1067 = vpop.f32.mrf.mxu0
    %v1068 = vadd.f32 %v1028, %v1067
    %v1069 = vpop.f32.mrf.mxu0
    %v1070 = vpop.f32.mrf.mxu0
    %v1071 = vpop.f32.mrf.mxu0
    %1072 = vdwg.mxu0
    %v1073 = vmax.f32 %v987, 0.0
    %v1074 = vmax.f32 %v989, 0.0
    %v1075 = vmax.f32 %v1068, 0.0
    %v1076 = vpack.c.bf16 %v1073, %v1073
    %v1077 = vpack.c.bf16 %v1074, %v1074
    %v1078 = vpack.c.bf16 %v1075, %v1075
    %v1079 = vld [vmem:[#allocation9] sm:$0xf]
    %v1080 = vld [vmem:[#allocation9 + $0x4] sm:$0xf]
    %v1081 = vld [vmem:[#allocation9 + $0x8] sm:$0xf]
    %v1082 = vld [vmem:[#allocation9 + $0xc] sm:$0xf]
    %v1083 = vld [vmem:[#allocation9 + $0x10] sm:$0xf]
    %v1084 = vld [vmem:[#allocation9 + $0x14] sm:$0xf]
    %v1085 = vld [vmem:[#allocation9 + $0x18] sm:$0xf]
    %v1086 = vld [vmem:[#allocation9 + $0x1c] sm:$0xf]
    %v1087 = vld [vmem:[#allocation9 + $0x20] sm:$0xf]
    %v1088 = vld [vmem:[#allocation9 + $0x24] sm:$0xf]
    %v1089 = vld [vmem:[#allocation9 + $0x28] sm:$0xf]
    %v1090 = vld [vmem:[#allocation9 + $0x2c] sm:$0xf]
    %v1091 = vld [vmem:[#allocation9 + $0x30] sm:$0xf]
    %v1092 = vld [vmem:[#allocation9 + $0x34] sm:$0xf]
    %v1093 = vld [vmem:[#allocation9 + $0x38] sm:$0xf]
    %v1094 = vld [vmem:[#allocation9 + $0x3c] sm:$0xf]
    %v1095 = vld [vmem:[#allocation9 + $0x40] sm:$0xf]
    %v1096 = vld [vmem:[#allocation9 + $0x44] sm:$0xf]
    %v1097 = vld [vmem:[#allocation9 + $0x48] sm:$0xf]
    %v1098 = vld [vmem:[#allocation9 + $0x4c] sm:$0xf]
    %v1099 = vld [vmem:[#allocation9 + $0x50] sm:$0xf]
    %v1100 = vld [vmem:[#allocation9 + $0x54] sm:$0xf]
    %v1101 = vld [vmem:[#allocation9 + $0x58] sm:$0xf]
    %v1102 = vld [vmem:[#allocation9 + $0x5c] sm:$0xf]
    %v1103 = vld [vmem:[#allocation9 + $0x60] sm:$0xf]
    %v1104 = vld [vmem:[#allocation9 + $0x64] sm:$0xf]
    %v1105 = vld [vmem:[#allocation9 + $0x68] sm:$0xf]
    %v1106 = vld [vmem:[#allocation9 + $0x6c] sm:$0xf]
    %v1107 = vld [vmem:[#allocation9 + $0x70] sm:$0xf]
    %v1108 = vld [vmem:[#allocation9 + $0x74] sm:$0xf]
    %v1109 = vld [vmem:[#allocation9 + $0x78] sm:$0xf]
    %v1110 = vld [vmem:[#allocation9 + $0x7c] sm:$0xf]
    %v1111 = vld [vmem:[#allocation9 + $0x80] sm:$0xf]
    %v1112 = vld [vmem:[#allocation9 + $0x84] sm:$0xf]
    %v1113 = vld [vmem:[#allocation9 + $0x88] sm:$0xf]
    %v1114 = vld [vmem:[#allocation9 + $0x8c] sm:$0xf]
    %v1115 = vld [vmem:[#allocation9 + $0x90] sm:$0xf]
    %v1116 = vld [vmem:[#allocation9 + $0x94] sm:$0xf]
    %v1117 = vld [vmem:[#allocation9 + $0x98] sm:$0xf]
    %v1118 = vld [vmem:[#allocation9 + $0x9c] sm:$0xf]
    %v1119 = vld [vmem:[#allocation9 + $0xa0] sm:$0xf]
    %v1120 = vld [vmem:[#allocation9 + $0xa4] sm:$0xf]
    %v1121 = vld [vmem:[#allocation9 + $0xa8] sm:$0xf]
    %v1122 = vld [vmem:[#allocation9 + $0xac] sm:$0xf]
    %v1123 = vld [vmem:[#allocation9 + $0xb0] sm:$0xf]
    %v1124 = vld [vmem:[#allocation9 + $0xb4] sm:$0xf]
    %v1125 = vld [vmem:[#allocation9 + $0xb8] sm:$0xf]
    %v1126 = vld [vmem:[#allocation9 + $0xbc] sm:$0xf]
    %v1127 = vld [vmem:[%s7] sm:$0x1]
    %v1129 = vlaneseq
    %v1130 = vshrl.u32 %v1129, 7
    %v1131 = vsub.s32 0, %v1130
    %v1132 = vrot.slane %v1127, %v1131
    %v1182 = vunpack.c.l.b16 %v1079
    %v1183 = vunpack.c.l.b16 %v1080
    %v1184 = vunpack.c.l.b16 %v1081
    %v1185 = vunpack.c.l.b16 %v1082
    %v1186 = vunpack.c.l.b16 %v1083
    %v1187 = vunpack.c.l.b16 %v1084
    %v1188 = vunpack.c.l.b16 %v1085
    %v1189 = vunpack.c.l.b16 %v1086
    %v1190 = vunpack.c.l.b16 %v1087
    %v1191 = vunpack.c.l.b16 %v1088
    %v1192 = vunpack.c.l.b16 %v1089
    %v1193 = vunpack.c.l.b16 %v1090
    %v1194 = vunpack.c.l.b16 %v1091
    %v1195 = vunpack.c.l.b16 %v1092
    %v1196 = vunpack.c.l.b16 %v1093
    %v1197 = vunpack.c.l.b16 %v1094
    %v1198 = vunpack.c.l.b16 %v1095
    %v1199 = vunpack.c.l.b16 %v1096
    %v1200 = vunpack.c.l.b16 %v1097
    %v1201 = vunpack.c.l.b16 %v1098
    %v1202 = vunpack.c.l.b16 %v1099
    %v1203 = vunpack.c.l.b16 %v1100
    %v1204 = vunpack.c.l.b16 %v1101
    %v1205 = vunpack.c.l.b16 %v1102
    %v1206 = vunpack.c.l.b16 %v1103
    %v1207 = vunpack.c.l.b16 %v1104
    %v1208 = vunpack.c.l.b16 %v1105
    %v1209 = vunpack.c.l.b16 %v1106
    %v1210 = vunpack.c.l.b16 %v1107
    %v1211 = vunpack.c.l.b16 %v1108
    %v1212 = vunpack.c.l.b16 %v1109
    %v1213 = vunpack.c.l.b16 %v1110
    %v1214 = vunpack.c.l.b16 %v1111
    %v1215 = vunpack.c.l.b16 %v1112
    %v1216 = vunpack.c.l.b16 %v1113
    %v1217 = vunpack.c.l.b16 %v1114
    %v1218 = vunpack.c.l.b16 %v1115
    %v1219 = vunpack.c.l.b16 %v1116
    %v1220 = vunpack.c.l.b16 %v1117
    %v1221 = vunpack.c.l.b16 %v1118
    %v1222 = vunpack.c.l.b16 %v1119
    %v1223 = vunpack.c.l.b16 %v1120
    %v1224 = vunpack.c.l.b16 %v1121
    %v1225 = vunpack.c.l.b16 %v1122
    %v1226 = vunpack.c.l.b16 %v1123
    %v1227 = vunpack.c.l.b16 %v1124
    %v1228 = vunpack.c.l.b16 %v1125
    %v1229 = vunpack.c.l.b16 %v1126
    %v1230 = vpack.c.b16 %v1183, %v1182
    %v1231 = vpack.c.b16 %v1185, %v1184
    %v1232 = vpack.c.b16 %v1187, %v1186
    %v1233 = vpack.c.b16 %v1189, %v1188
    %v1234 = vpack.c.b16 %v1191, %v1190
    %v1235 = vpack.c.b16 %v1193, %v1192
    %v1236 = vpack.c.b16 %v1195, %v1194
    %v1237 = vpack.c.b16 %v1197, %v1196
    %v1238 = vpack.c.b16 %v1199, %v1198
    %v1239 = vpack.c.b16 %v1201, %v1200
    %v1240 = vpack.c.b16 %v1203, %v1202
    %v1241 = vpack.c.b16 %v1205, %v1204
    %v1242 = vpack.c.b16 %v1207, %v1206
    %v1243 = vpack.c.b16 %v1209, %v1208
    %v1244 = vpack.c.b16 %v1211, %v1210
    %v1245 = vpack.c.b16 %v1213, %v1212
    %v1246 = vpack.c.b16 %v1215, %v1214
    %v1247 = vpack.c.b16 %v1217, %v1216
    %v1248 = vpack.c.b16 %v1219, %v1218
    %v1249 = vpack.c.b16 %v1221, %v1220
    %v1250 = vpack.c.b16 %v1223, %v1222
    %v1251 = vpack.c.b16 %v1225, %v1224
    %v1252 = vpack.c.b16 %v1227, %v1226
    %v1253 = vpack.c.b16 %v1229, %v1228
    %1278 = vmatprep.subr.bf16.mxu0 0
    %1279 = vmatpush1.bf16.msra.mxu0 %v1237
    %1280 = vmatprep.subr.bf16.mxu0 0
    %1281 = vmatpush1.bf16.msra.mxu0 %v1236
    %1282 = vmatprep.subr.bf16.mxu0 0
    %1283 = vmatpush1.bf16.msra.mxu0 %v1235
    %1284 = vmatprep.subr.bf16.mxu0 0
    %1285 = vmatpush1.bf16.msra.mxu0 %v1234
    %1286 = vmatprep.subr.bf16.mxu0 0
    %1287 = vmatpush1.bf16.msra.mxu0 %v1233
    %1288 = vmatprep.subr.bf16.mxu0 0
    %1289 = vmatpush1.bf16.msra.mxu0 %v1232
    %1290 = vmatprep.subr.bf16.mxu0 0
    %1291 = vmatpush1.bf16.msra.mxu0 %v1231
    %1292 = vmatprep.subr.bf16.mxu0 0
    %1293 = vmatpush1.bf16.msra.mxu0 %v1230
    %1294 = vmatprep.subr.bf16.mxu0 0
    %1295 = vmatpush2.bf16.msra.mxu0 %v1245
    %1296 = vmatprep.subr.bf16.mxu0 0
    %1297 = vmatpush2.bf16.msra.mxu0 %v1244
    %1298 = vmatprep.subr.bf16.mxu0 0
    %1299 = vmatpush2.bf16.msra.mxu0 %v1243
    %1300 = vmatprep.subr.bf16.mxu0 0
    %1301 = vmatpush2.bf16.msra.mxu0 %v1242
    %1302 = vmatprep.subr.bf16.mxu0 0
    %1303 = vmatpush2.bf16.msra.mxu0 %v1241
    %1304 = vmatprep.subr.bf16.mxu0 0
    %1305 = vmatpush2.bf16.msra.mxu0 %v1240
    %1306 = vmatprep.subr.bf16.mxu0 0
    %1307 = vmatpush2.bf16.msra.mxu0 %v1239
    %1308 = vmatprep.subr.bf16.mxu0 0
    %1309 = vmatpush2.bf16.msra.mxu0 %v1238
    %1310 = vmatprep.mubr.bf16.mxu0 %v1077
    %1311 = vmatmul.mubr.bf16.gmra.mxu0 %v1076
    %v1312 = vpop.f32.mrf.mxu0
    %v1313 = vadd.f32 %v1132, %v1312
    %v1314 = vpop.f32.mrf.mxu0
    %v1315 = vpop.f32.mrf.mxu0
    %v1316 = vpop.f32.mrf.mxu0
    %1317 = vdwg.mxu0
    %1318 = vmatprep.subr.bf16.mxu0 0
    %1319 = vmatpush1.bf16.msra.mxu0 %v1253
    %1320 = vmatprep.subr.bf16.mxu0 0
    %1321 = vmatpush1.bf16.msra.mxu0 %v1252
    %1322 = vmatprep.subr.bf16.mxu0 0
    %1323 = vmatpush1.bf16.msra.mxu0 %v1251
    %1324 = vmatprep.subr.bf16.mxu0 0
    %1325 = vmatpush1.bf16.msra.mxu0 %v1250
    %1326 = vmatprep.subr.bf16.mxu0 0
    %1327 = vmatpush1.bf16.msra.mxu0 %v1249
    %1328 = vmatprep.subr.bf16.mxu0 0
    %1329 = vmatpush1.bf16.msra.mxu0 %v1248
    %1330 = vmatprep.subr.bf16.mxu0 0
    %1331 = vmatpush1.bf16.msra.mxu0 %v1247
    %1332 = vmatprep.subr.bf16.mxu0 0
    %1333 = vmatpush1.bf16.msra.mxu0 %v1246
    %1334 = vmatprep.subr.bf16.mxu0 0
    %1335 = vmatpush2.bf16.msra.mxu0 0
    %1336 = vmatprep.subr.bf16.mxu0 0
    %1337 = vmatpush2.bf16.msra.mxu0 0
    %1338 = vmatprep.subr.bf16.mxu0 0
    %1339 = vmatpush2.bf16.msra.mxu0 0
    %1340 = vmatprep.subr.bf16.mxu0 0
    %1341 = vmatpush2.bf16.msra.mxu0 0
    %1342 = vmatprep.subr.bf16.mxu0 0
    %1343 = vmatpush2.bf16.msra.mxu0 0
    %1344 = vmatprep.subr.bf16.mxu0 0
    %1345 = vmatpush2.bf16.msra.mxu0 0
    %1346 = vmatprep.subr.bf16.mxu0 0
    %1347 = vmatpush2.bf16.msra.mxu0 0
    %1348 = vmatprep.subr.bf16.mxu0 0
    %1349 = vmatpush2.bf16.msra.mxu0 0
    %1350 = vmatprep.mubr.bf16.mxu0 0
    %1351 = vmatmul.mubr.bf16.gmra.mxu0 %v1078
    %v1352 = vpop.f32.mrf.mxu0
    %v1353 = vadd.f32 %v1313, %v1352
    %v1354 = vpop.f32.mrf.mxu0
    %v1355 = vpop.f32.mrf.mxu0
    %v1356 = vpop.f32.mrf.mxu0
    %1357 = vdwg.mxu0
    %s1358 = sld [smem:[#allocation2]]
    %v1359 = vtanh.pop %v1353
    %v1360 = vstv %s1358
    %v1361 = vmul.f32 %v1360, %v1359
    %1362 = vst [vmem:[#allocation11] sm:$0xff] %v1361
    // Predicated region
    $region50: #{tpu_custom_call.1} parent=1 // pred_check
      _
    $region51: #{tpu_custom_call.1} parent=1 // pred_check_branch
      %1364 = sbr.rel (0) target = $region53
    $region52: #{tpu_custom_call.1} parent=1 // pred_region
      %s1366 = ssub.s32 128, 128
      %1367 = vsyncadd [#allocation5], %s1366
      %s1369 = sshll.u32 [#allocation11], 4
      %s1370 = int_to_ptr.vmem [resolvable:$true] %s1369
      %1372 = dma.vmem_to_hbm [thread:$0]  %s1370, 128, %s8, [#allocation5]
    $region53: #{tpu_custom_call.1} parent=1 // pred_fallthru
      _
    // Predicated region
    $region54: #{tpu_custom_call.1} parent=1 // pred_check
      _
    $region55: #{tpu_custom_call.1} parent=1 // pred_check_branch
      %1374 = sbr.rel (0) target = $region57
    $region56: #{tpu_custom_call.1} parent=1 // pred_region
      %1375 = dma.done [#allocation5], 128
    $region57: #{tpu_custom_call.1} parent=1 // pred_fallthru
      _
    %1376 = vsyncpa [#allocation4], 1
    %1377 = vsyncpa [#allocation7], 1
    %1378 = vsyncpa [#allocation10], 1
    %1379 = vsyncpa [#allocation5], 1

// kernel: tpu_custom_call.1
$region0: #{tpu_custom_call.1}
  #allocation0 [shape = 'u32[]', space=smem, size = 0x4, offset = 0x4, fixed_abs, tag = 'smem constant byte address 0x4 - core index']
  #allocation1 [shape = 'u32[144,128]{1,0:T(1,128)}', space=vmem, size = 0x12000, scoped, tag = 'internal scratch']
  #allocation2 [shape = 'f32[1,1]{1,0:T(1,128)S(6)}', space=smem, size = 0x200, scoped, tag = 'scoped memory for tpu_custom_call.1']
  %s0 = inlined_call_operand.<no memory space> [shape: f32[1,1], index: 0, kind: input, shape index: {}]
  %s1 = inlined_call_operand.hbm [shape: f32[8,17], index: 1, kind: input, shape index: {}]
  %s2 = inlined_call_operand.hbm [shape: bf16[17,512], index: 2, kind: input, shape index: {}]
  %s3 = inlined_call_operand.vmem [shape: f32[1,512], index: 3, kind: input, shape index: {}]
  %s4 = inlined_call_operand.hbm [shape: bf16[512,384], index: 4, kind: input, shape index: {}]
  %s5 = inlined_call_operand.vmem [shape: f32[1,384], index: 5, kind: input, shape index: {}]
  %s6 = inlined_call_operand.hbm [shape: bf16[384,128], index: 6, kind: input, shape index: {}]
  %s7 = inlined_call_operand.vmem [shape: f32[1,128], index: 7, kind: input, shape index: {}]
  %s8 = inlined_call_operand.hbm [shape: f32[8,128], index: 8, kind: output, shape index: {}]
  %s9 = sld [smem:[#allocation0]]
  $region58: #{tpu_custom_call.1} parent=0
    _
  %s11 = ssub.s32 1, %s9
  %s12 = scalar_select 0, %s11, %s9
  %13 = sst [smem:[#allocation2]] %s0
  $region1: #{tpu_custom_call.1} parent=0
    #allocation3 [shape = 'u8[4096]{0}', space=vmem, size = 0x1000, scoped, tag = 'input window, operand 1, single buffered']
    #allocation4 [shape = 's32[1]{0}', space=sflag, size = 0x4, scoped, tag = 'scoped memory for tpu_custom_call.1']
    #allocation5 [shape = 's32[1]{0}', space=sflag, size = 0x4, scoped, tag = 'scoped memory for tpu_custom_call.1']
    #allocation6 [shape = 'u8[24576]{0}', space=vmem, size = 0x6000, scoped, tag = 'input window, operand 2, single buffered']
    #allocation7 [shape = 's32[1]{0}', space=sflag, size = 0x4, scoped, tag = 'scoped memory for tpu_custom_call.1']
    #allocation8 [shape = 'u8[393216]{0}', space=vmem, size = 0x60000, scoped, tag = 'input window, operand 4, single buffered']
    #allocation9 [shape = 'u8[98304]{0}', space=vmem, size = 0x18000, scoped, tag = 'input window, operand 6, single buffered']
    #allocation10 [shape = 's32[1]{0}', space=sflag, size = 0x4, scoped, tag = 'scoped memory for tpu_custom_call.1']
    #allocation11 [shape = 'u8[4096]{0}', space=vmem, size = 0x1000, scoped, tag = 'output window, operand 0, single buffered']
    %14 = vsyncpa [#allocation4], 0
    %15 = vsyncpa [#allocation7], 0
    %16 = vsyncpa [#allocation10], 0
    %17 = vsyncpa [#allocation5], 0
    // Predicated region
    $region2: #{tpu_custom_call.1} parent=1 // pred_check
      _
    $region3: #{tpu_custom_call.1} parent=1 // pred_check_branch
      %19 = sbr.rel (0) target = $region5
    $region4: #{tpu_custom_call.1} parent=1 // pred_region
      _
    $region5: #{tpu_custom_call.1} parent=1 // pred_fallthru
      _
    // Predicated region
    $region6: #{tpu_custom_call.1} parent=1 // pred_check
      _
    $region7: #{tpu_custom_call.1} parent=1 // pred_check_branch
      %21 = sbr.rel (0) target = $region9
    $region8: #{tpu_custom_call.1} parent=1 // pred_region
      %s23 = ssub.s32 128, 128
      %24 = vsyncadd [#allocation4], %s23
      %s26 = sshll.u32 [#allocation3], 4
      %s27 = int_to_ptr.vmem [resolvable:$true] %s26
      %29 = dma.hbm_to_vmem [thread:$0]  %s1, 128, %s27, [#allocation4]
    $region9: #{tpu_custom_call.1} parent=1 // pred_fallthru
      _
    // Predicated region
    $region10: #{tpu_custom_call.1} parent=1 // pred_check
      _
    $region11: #{tpu_custom_call.1} parent=1 // pred_check_branch
      %31 = sbr.rel (0) target = $region13
    $region12: #{tpu_custom_call.1} parent=1 // pred_region
      %s33 = ssub.s32 768, 768
      %34 = vsyncadd [#allocation7], %s33
      %s35 = sshll.u32 [#allocation6], 4
      %s36 = int_to_ptr.vmem [resolvable:$true] %s35
      %41 = dma.hbm_to_vmem [thread:$0]  %s2, 768, %s36, [#allocation7], 256, 256, 16
    $region13: #{tpu_custom_call.1} parent=1 // pred_fallthru
      _
    // Predicated region
    $region14: #{tpu_custom_call.1} parent=1 // pred_check
      _
    $region15: #{tpu_custom_call.1} parent=1 // pred_check_branch
      %43 = sbr.rel (0) target = $region17
    $region16: #{tpu_custom_call.1} parent=1 // pred_region
      _
    $region17: #{tpu_custom_call.1} parent=1 // pred_fallthru
      _
    // Predicated region
    $region18: #{tpu_custom_call.1} parent=1 // pred_check
      _
    $region19: #{tpu_custom_call.1} parent=1 // pred_check_branch
      %45 = sbr.rel (0) target = $region21
    $region20: #{tpu_custom_call.1} parent=1 // pred_region
      %s47 = ssub.s32 12288, 12288
      %48 = vsyncadd [#allocation7], %s47
      %s49 = sshll.u32 [#allocation8], 4
      %s50 = int_to_ptr.vmem [resolvable:$true] %s49
      %55 = dma.hbm_to_vmem [thread:$0]  %s4, 12288, %s50, [#allocation7], 192, 192, 12
    $region21: #{tpu_custom_call.1} parent=1 // pred_fallthru
      _
    // Predicated region
    $region22: #{tpu_custom_call.1} parent=1 // pred_check
      _
    $region23: #{tpu_custom_call.1} parent=1 // pred_check_branch
      %57 = sbr.rel (0) target = $region25
    $region24: #{tpu_custom_call.1} parent=1 // pred_region
      _
    $region25: #{tpu_custom_call.1} parent=1 // pred_fallthru
      _
    // Predicated region
    $region26: #{tpu_custom_call.1} parent=1 // pred_check
      _
    $region27: #{tpu_custom_call.1} parent=1 // pred_check_branch
      %59 = sbr.rel (0) target = $region29
    $region28: #{tpu_custom_call.1} parent=1 // pred_region
      %s61 = ssub.s32 3072, 3072
      %62 = vsyncadd [#allocation10], %s61
      %s63 = sshll.u32 [#allocation9], 4
      %s64 = int_to_ptr.vmem [resolvable:$true] %s63
      %69 = dma.hbm_to_vmem [thread:$0]  %s6, 3072, %s64, [#allocation10], 64, 64, 4
    $region29: #{tpu_custom_call.1} parent=1 // pred_fallthru
      _
    // Predicated region
    $region30: #{tpu_custom_call.1} parent=1 // pred_check
      _
    $region31: #{tpu_custom_call.1} parent=1 // pred_check_branch
      %71 = sbr.rel (0) target = $region33
    $region32: #{tpu_custom_call.1} parent=1 // pred_region
      _
    $region33: #{tpu_custom_call.1} parent=1 // pred_fallthru
      _
    // Predicated region
    $region34: #{tpu_custom_call.1} parent=1 // pred_check
      _
    $region35: #{tpu_custom_call.1} parent=1 // pred_check_branch
      %73 = sbr.rel (0) target = $region37
    $region36: #{tpu_custom_call.1} parent=1 // pred_region
      %74 = dma.done [#allocation4], 128
    $region37: #{tpu_custom_call.1} parent=1 // pred_fallthru
      _
    // Predicated region
    $region38: #{tpu_custom_call.1} parent=1 // pred_check
      _
    $region39: #{tpu_custom_call.1} parent=1 // pred_check_branch
      %76 = sbr.rel (0) target = $region41
    $region40: #{tpu_custom_call.1} parent=1 // pred_region
      %77 = dma.done [#allocation7], 768
    $region41: #{tpu_custom_call.1} parent=1 // pred_fallthru
      _
    // Predicated region
    $region42: #{tpu_custom_call.1} parent=1 // pred_check
      _
    $region43: #{tpu_custom_call.1} parent=1 // pred_check_branch
      %79 = sbr.rel (0) target = $region45
    $region44: #{tpu_custom_call.1} parent=1 // pred_region
      %80 = dma.done [#allocation7], 12288
    $region45: #{tpu_custom_call.1} parent=1 // pred_fallthru
      _
    // Predicated region
    $region46: #{tpu_custom_call.1} parent=1 // pred_check
      _
    $region47: #{tpu_custom_call.1} parent=1 // pred_check_branch
      %82 = sbr.rel (0) target = $region49
    $region48: #{tpu_custom_call.1} parent=1 // pred_region
      %83 = dma.done [#allocation10], 3072
    $region49: #{tpu_custom_call.1} parent=1 // pred_fallthru
      _
    %v85 = vld [vmem:[#allocation3] sm:$0xff]
    %v86 = vpack.c.bf16 %v85, %v85
    %v87 = vld [vmem:[#allocation6] sm:$0xff]
    %v88 = vld [vmem:[#allocation6 + $0x8] sm:$0xff]
    %v89 = vld [vmem:[#allocation6 + $0x10] sm:$0xff]
    %v90 = vld [vmem:[#allocation6 + $0x18] sm:$0xff]
    %v91 = vld [vmem:[#allocation6 + $0x20] sm:$0x11]
    %v92 = vld [vmem:[#allocation6 + $0x28] sm:$0x11]
    %v93 = vld [vmem:[%s3] sm:$0xf]
    %v95 = vlaneseq
    %v96 = vshrl.u32 %v95, 7
    %v97 = vsub.s32 0, %v96
    %v98 = vrot.slane %v93, %v97
    %v99 = vlaneseq
    %v100 = vshrl.u32 %v99, 7
    %v101 = vsub.s32 1, %v100
    %v102 = vrot.slane %v93, %v101
    %v103 = vlaneseq
    %v104 = vshrl.u32 %v103, 7
    %v105 = vsub.s32 2, %v104
    %v106 = vrot.slane %v93, %v105
    %v107 = vlaneseq
    %v108 = vshrl.u32 %v107, 7
    %v109 = vsub.s32 3, %v108
    %v110 = vrot.slane %v93, %v109
    %v121 = vunpack.c.l.b16 %v87
    %v122 = vunpack.c.h.b16 %v87
    %v123 = vunpack.c.l.b16 %v88
    %v124 = vunpack.c.h.b16 %v88
    %v125 = vunpack.c.l.b16 %v89
    %v126 = vunpack.c.h.b16 %v89
    %v127 = vunpack.c.l.b16 %v90
    %v128 = vunpack.c.h.b16 %v90
    %v129 = vunpack.c.l.b16 %v91
    %v130 = vunpack.c.h.b16 %v91
    %v131 = vunpack.c.l.b16 %v92
    %v132 = vunpack.c.h.b16 %v92
    %v133 = vpack.c.b16 %v125, %v121
    %v134 = vpack.c.b16 %v126, %v122
    %v135 = vpack.c.b16 %v127, %v123
    %v136 = vpack.c.b16 %v128, %v124
    %v137 = vpack.c.b16 %v129, %v129
    %v138 = vpack.c.b16 %v130, %v130
    %v139 = vpack.c.b16 %v131, %v131
    %v140 = vpack.c.b16 %v132, %v132
    %vm145 = vcmask 138240
    %v147 = vsel %vm145, %v86, 0
    %vm149 = vcmask 1040384
    %v150 = vsel 0, 4294967295, 65535
    %v151 = vsel %vm149, %v150, 0
    %v153 = vand.u32 %v137, %v151
    %v156 = vand.u32 %v138, %v151
    %v159 = vand.u32 %v139, %v151
    %v162 = vand.u32 %v140, %v151
    %164 = vmatprep.subr.bf16.mxu0 0
    %165 = vmatpush1.bf16.msra.mxu0 0
    %166 = vmatprep.subr.bf16.mxu0 0
    %167 = vmatpush1.bf16.msra.mxu0 0
    %168 = vmatprep.subr.bf16.mxu0 0
    %169 = vmatpush1.bf16.msra.mxu0 0
    %170 = vmatprep.subr.bf16.mxu0 0
    %171 = vmatpush1.bf16.msra.mxu0 0
    %172 = vmatprep.subr.bf16.mxu0 0
    %173 = vmatpush1.bf16.msra.mxu0 0
    %174 = vmatprep.subr.bf16.mxu0 0
    %175 = vmatpush1.bf16.msra.mxu0 0
    %176 = vmatprep.subr.bf16.mxu0 %v156
    %177 = vmatpush1.bf16.msra.mxu0 %v153
    %178 = vmatprep.subr.bf16.mxu0 %v134
    %179 = vmatpush1.bf16.msra.mxu0 %v133
    %180 = vmatprep.subr.bf16.mxu0 0
    %181 = vmatpush2.bf16.msra.mxu0 0
    %182 = vmatprep.subr.bf16.mxu0 0
    %183 = vmatpush2.bf16.msra.mxu0 0
    %184 = vmatprep.subr.bf16.mxu0 0
    %185 = vmatpush2.bf16.msra.mxu0 0
    %186 = vmatprep.subr.bf16.mxu0 0
    %187 = vmatpush2.bf16.msra.mxu0 0
    %188 = vmatprep.subr.bf16.mxu0 0
    %189 = vmatpush2.bf16.msra.mxu0 0
    %190 = vmatprep.subr.bf16.mxu0 0
    %191 = vmatpush2.bf16.msra.mxu0 0
    %192 = vmatprep.subr.bf16.mxu0 0
    %193 = vmatpush2.bf16.msra.mxu0 0
    %194 = vmatprep.subr.bf16.mxu0 0
    %195 = vmatpush2.bf16.msra.mxu0 0
    %196 = vmatprep.mubr.bf16.mxu0 0
    %197 = vmatmul.mubr.bf16.gmra.mxu0 %v147
    %v198 = vpop.f32.mrf.mxu0
    %v199 = vadd.f32 %v98, %v198
    %v200 = vpop.f32.mrf.mxu0
    %v201 = vadd.f32 %v102, %v200
    %v202 = vpop.f32.mrf.mxu0
    %v203 = vpop.f32.mrf.mxu0
    %204 = vdwg.mxu0
    %205 = vmatprep.subr.bf16.mxu0 0
    %206 = vmatpush1.bf16.msra.mxu0 0
    %207 = vmatprep.subr.bf16.mxu0 0
    %208 = vmatpush1.bf16.msra.mxu0 0
    %209 = vmatprep.subr.bf16.mxu0 0
    %210 = vmatpush1.bf16.msra.mxu0 0
    %211 = vmatprep.subr.bf16.mxu0 0
    %212 = vmatpush1.bf16.msra.mxu0 0
    %213 = vmatprep.subr.bf16.mxu0 0
    %214 = vmatpush1.bf16.msra.mxu0 0
    %215 = vmatprep.subr.bf16.mxu0 0
    %216 = vmatpush1.bf16.msra.mxu0 0
    %217 = vmatprep.subr.bf16.mxu0 %v162
    %218 = vmatpush1.bf16.msra.mxu0 %v159
    %219 = vmatprep.subr.bf16.mxu0 %v136
    %220 = vmatpush1.bf16.msra.mxu0 %v135
    %221 = vmatprep.subr.bf16.mxu0 0
    %222 = vmatpush2.bf16.msra.mxu0 0
    %223 = vmatprep.subr.bf16.mxu0 0
    %224 = vmatpush2.bf16.msra.mxu0 0
    %225 = vmatprep.subr.bf16.mxu0 0
    %226 = vmatpush2.bf16.msra.mxu0 0
    %227 = vmatprep.subr.bf16.mxu0 0
    %228 = vmatpush2.bf16.msra.mxu0 0
    %229 = vmatprep.subr.bf16.mxu0 0
    %230 = vmatpush2.bf16.msra.mxu0 0
    %231 = vmatprep.subr.bf16.mxu0 0
    %232 = vmatpush2.bf16.msra.mxu0 0
    %233 = vmatprep.subr.bf16.mxu0 0
    %234 = vmatpush2.bf16.msra.mxu0 0
    %235 = vmatprep.subr.bf16.mxu0 0
    %236 = vmatpush2.bf16.msra.mxu0 0
    %237 = vmatprep.mubr.bf16.mxu0 0
    %238 = vmatmul.mubr.bf16.gmra.mxu0 %v147
    %v239 = vpop.f32.mrf.mxu0
    %v240 = vadd.f32 %v106, %v239
    %v241 = vpop.f32.mrf.mxu0
    %v242 = vadd.f32 %v110, %v241
    %v243 = vpop.f32.mrf.mxu0
    %v244 = vpop.f32.mrf.mxu0
    %245 = vdwg.mxu0
    %v246 = vmax.f32 %v199, 0.0
    %v247 = vmax.f32 %v201, 0.0
    %v248 = vmax.f32 %v240, 0.0
    %v249 = vmax.f32 %v242, 0.0
    %v250 = vpack.c.bf16 %v246, %v246
    %v251 = vpack.c.bf16 %v247, %v247
    %v252 = vpack.c.bf16 %v248, %v248
    %v253 = vpack.c.bf16 %v249, %v249
    %v254 = vld [vmem:[#allocation8] sm:$0xff]
    %v255 = vld [vmem:[#allocation8 + $0x8] sm:$0xf]
    %v256 = vld [vmem:[#allocation8 + $0xc] sm:$0xff]
    %v257 = vld [vmem:[#allocation8 + $0x14] sm:$0xf]
    %v258 = vld [vmem:[#allocation8 + $0x18] sm:$0xff]
    %v259 = vld [vmem:[#allocation8 + $0x20] sm:$0xf]
    %v260 = vld [vmem:[#allocation8 + $0x24] sm:$0xff]
    %v261 = vld [vmem:[#allocation8 + $0x2c] sm:$0xf]
    %v262 = vld [vmem:[#allocation8 + $0x30] sm:$0xff]
    %v263 = vld [vmem:[#allocation8 + $0x38] sm:$0xf]
    %v264 = vld [vmem:[#allocation8 + $0x3c] sm:$0xff]
    %v265 = vld [vmem:[#allocation8 + $0x44] sm:$0xf]
    %v266 = vld [vmem:[#allocation8 + $0x48] sm:$0xff]
    %v267 = vld [vmem:[#allocation8 + $0x50] sm:$0xf]
    %v268 = vld [vmem:[#allocation8 + $0x54] sm:$0xff]
    %v269 = vld [vmem:[#allocation8 + $0x5c] sm:$0xf]
    %v270 = vld [vmem:[#allocation8 + $0x60] sm:$0xff]
    %v271 = vld [vmem:[#allocation8 + $0x68] sm:$0xf]
    %v272 = vld [vmem:[#allocation8 + $0x6c] sm:$0xff]
    %v273 = vld [vmem:[#allocation8 + $0x74] sm:$0xf]
    %v274 = vld [vmem:[#allocation8 + $0x78] sm:$0xff]
    %v275 = vld [vmem:[#allocation8 + $0x80] sm:$0xf]
    %v276 = vld [vmem:[#allocation8 + $0x84] sm:$0xff]
    %v277 = vld [vmem:[#allocation8 + $0x8c] sm:$0xf]
    %v278 = vld [vmem:[#allocation8 + $0x90] sm:$0xff]
    %v279 = vld [vmem:[#allocation8 + $0x98] sm:$0xf]
    %v280 = vld [vmem:[#allocation8 + $0x9c] sm:$0xff]
    %v281 = vld [vmem:[#allocation8 + $0xa4] sm:$0xf]
    %v282 = vld [vmem:[#allocation8 + $0xa8] sm:$0xff]
    %v283 = vld [vmem:[#allocation8 + $0xb0] sm:$0xf]
    %v284 = vld [vmem:[#allocation8 + $0xb4] sm:$0xff]
    %v285 = vld [vmem:[#allocation8 + $0xbc] sm:$0xf]
    %v286 = vld [vmem:[#allocation8 + $0xc0] sm:$0xff]
    %v287 = vld [vmem:[#allocation8 + $0xc8] sm:$0xf]
    %v288 = vld [vmem:[#allocation8 + $0xcc] sm:$0xff]
    %v289 = vld [vmem:[#allocation8 + $0xd4] sm:$0xf]
    %v290 = vld [vmem:[#allocation8 + $0xd8] sm:$0xff]
    %v291 = vld [vmem:[#allocation8 + $0xe0] sm:$0xf]
    %v292 = vld [vmem:[#allocation8 + $0xe4] sm:$0xff]
    %v293 = vld [vmem:[#allocation8 + $0xec] sm:$0xf]
    %v294 = vld [vmem:[#allocation8 + $0xf0] sm:$0xff]
    %v295 = vld [vmem:[#allocation8 + $0xf8] sm:$0xf]
    %v296 = vld [vmem:[#allocation8 + $0xfc] sm:$0xff]
    %v297 = vld [vmem:[#allocation8 + $0x104] sm:$0xf]
    %v298 = vld [vmem:[#allocation8 + $0x108] sm:$0xff]
    %v299 = vld [vmem:[#allocation8 + $0x110] sm:$0xf]
    %v300 = vld [vmem:[#allocation8 + $0x114] sm:$0xff]
    %v301 = vld [vmem:[#allocation8 + $0x11c] sm:$0xf]
    %v302 = vld [vmem:[#allocation8 + $0x120] sm:$0xff]
    %v303 = vld [vmem:[#allocation8 + $0x128] sm:$0xf]
    %v304 = vld [vmem:[#allocation8 + $0x12c] sm:$0xff]
    %v305 = vld [vmem:[#allocation8 + $0x134] sm:$0xf]
    %v306 = vld [vmem:[#allocation8 + $0x138] sm:$0xff]
    %v307 = vld [vmem:[#allocation8 + $0x140] sm:$0xf]
    %v308 = vld [vmem:[#allocation8 + $0x144] sm:$0xff]
    %v309 = vld [vmem:[#allocation8 + $0x14c] sm:$0xf]
    %v310 = vld [vmem:[#allocation8 + $0x150] sm:$0xff]
    %v311 = vld [vmem:[#allocation8 + $0x158] sm:$0xf]
    %v312 = vld [vmem:[#allocation8 + $0x15c] sm:$0xff]
    %v313 = vld [vmem:[#allocation8 + $0x164] sm:$0xf]
    %v314 = vld [vmem:[#allocation8 + $0x168] sm:$0xff]
    %v315 = vld [vmem:[#allocation8 + $0x170] sm:$0xf]
    %v316 = vld [vmem:[#allocation8 + $0x174] sm:$0xff]
    %v317 = vld [vmem:[#allocation8 + $0x17c] sm:$0xf]
    %v318 = vld [vmem:[#allocation8 + $0x180] sm:$0xff]
    %v319 = vld [vmem:[#allocation8 + $0x188] sm:$0xf]
    %v320 = vld [vmem:[#allocation8 + $0x18c] sm:$0xff]
    %v321 = vld [vmem:[#allocation8 + $0x194] sm:$0xf]
    %v322 = vld [vmem:[#allocation8 + $0x198] sm:$0xff]
    %v323 = vld [vmem:[#allocation8 + $0x1a0] sm:$0xf]
    %v324 = vld [vmem:[#allocation8 + $0x1a4] sm:$0xff]
    %v325 = vld [vmem:[#allocation8 + $0x1ac] sm:$0xf]
    %v326 = vld [vmem:[#allocation8 + $0x1b0] sm:$0xff]
    %v327 = vld [vmem:[#allocation8 + $0x1b8] sm:$0xf]
    %v328 = vld [vmem:[#allocation8 + $0x1bc] sm:$0xff]
    %v329 = vld [vmem:[#allocation8 + $0x1c4] sm:$0xf]
    %v330 = vld [vmem:[#allocation8 + $0x1c8] sm:$0xff]
    %v331 = vld [vmem:[#allocation8 + $0x1d0] sm:$0xf]
    %v332 = vld [vmem:[#allocation8 + $0x1d4] sm:$0xff]
    %v333 = vld [vmem:[#allocation8 + $0x1dc] sm:$0xf]
    %v334 = vld [vmem:[#allocation8 + $0x1e0] sm:$0xff]
    %v335 = vld [vmem:[#allocation8 + $0x1e8] sm:$0xf]
    %v336 = vld [vmem:[#allocation8 + $0x1ec] sm:$0xff]
    %v337 = vld [vmem:[#allocation8 + $0x1f4] sm:$0xf]
    %v338 = vld [vmem:[#allocation8 + $0x1f8] sm:$0xff]
    %v339 = vld [vmem:[#allocation8 + $0x200] sm:$0xf]
    %v340 = vld [vmem:[#allocation8 + $0x204] sm:$0xff]
    %v341 = vld [vmem:[#allocation8 + $0x20c] sm:$0xf]
    %v342 = vld [vmem:[#allocation8 + $0x210] sm:$0xff]
    %v343 = vld [vmem:[#allocation8 + $0x218] sm:$0xf]
    %v344 = vld [vmem:[#allocation8 + $0x21c] sm:$0xff]
    %v345 = vld [vmem:[#allocation8 + $0x224] sm:$0xf]
    %v346 = vld [vmem:[#allocation8 + $0x228] sm:$0xff]
    %v347 = vld [vmem:[#allocation8 + $0x230] sm:$0xf]
    %v348 = vld [vmem:[#allocation8 + $0x234] sm:$0xff]
    %v349 = vld [vmem:[#allocation8 + $0x23c] sm:$0xf]
    %v350 = vld [vmem:[#allocation8 + $0x240] sm:$0xff]
    %v351 = vld [vmem:[#allocation8 + $0x248] sm:$0xf]
    %v352 = vld [vmem:[#allocation8 + $0x24c] sm:$0xff]
    %v353 = vld [vmem:[#allocation8 + $0x254] sm:$0xf]
    %v354 = vld [vmem:[#allocation8 + $0x258] sm:$0xff]
    %v355 = vld [vmem:[#allocation8 + $0x260] sm:$0xf]
    %v356 = vld [vmem:[#allocation8 + $0x264] sm:$0xff]
    %v357 = vld [vmem:[#allocation8 + $0x26c] sm:$0xf]
    %v358 = vld [vmem:[#allocation8 + $0x270] sm:$0xff]
    %v359 = vld [vmem:[#allocation8 + $0x278] sm:$0xf]
    %v360 = vld [vmem:[#allocation8 + $0x27c] sm:$0xff]
    %v361 = vld [vmem:[#allocation8 + $0x284] sm:$0xf]
    %v362 = vld [vmem:[#allocation8 + $0x288] sm:$0xff]
    %v363 = vld [vmem:[#allocation8 + $0x290] sm:$0xf]
    %v364 = vld [vmem:[#allocation8 + $0x294] sm:$0xff]
    %v365 = vld [vmem:[#allocation8 + $0x29c] sm:$0xf]
    %v366 = vld [vmem:[#allocation8 + $0x2a0] sm:$0xff]
    %v367 = vld [vmem:[#allocation8 + $0x2a8] sm:$0xf]
    %v368 = vld [vmem:[#allocation8 + $0x2ac] sm:$0xff]
    %v369 = vld [vmem:[#allocation8 + $0x2b4] sm:$0xf]
    %v370 = vld [vmem:[#allocation8 + $0x2b8] sm:$0xff]
    %v371 = vld [vmem:[#allocation8 + $0x2c0] sm:$0xf]
    %v372 = vld [vmem:[#allocation8 + $0x2c4] sm:$0xff]
    %v373 = vld [vmem:[#allocation8 + $0x2cc] sm:$0xf]
    %v374 = vld [vmem:[#allocation8 + $0x2d0] sm:$0xff]
    %v375 = vld [vmem:[#allocation8 + $0x2d8] sm:$0xf]
    %v376 = vld [vmem:[#allocation8 + $0x2dc] sm:$0xff]
    %v377 = vld [vmem:[#allocation8 + $0x2e4] sm:$0xf]
    %v378 = vld [vmem:[#allocation8 + $0x2e8] sm:$0xff]
    %v379 = vld [vmem:[#allocation8 + $0x2f0] sm:$0xf]
    %v380 = vld [vmem:[#allocation8 + $0x2f4] sm:$0xff]
    %v381 = vld [vmem:[#allocation8 + $0x2fc] sm:$0xf]
    %v382 = vld [vmem:[%s5] sm:$0x7]
    %v384 = vlaneseq
    %v385 = vshrl.u32 %v384, 7
    %v386 = vsub.s32 0, %v385
    %v387 = vrot.slane %v382, %v386
    %v388 = vlaneseq
    %v389 = vshrl.u32 %v388, 7
    %v390 = vsub.s32 1, %v389
    %v391 = vrot.slane %v382, %v390
    %v392 = vlaneseq
    %v393 = vshrl.u32 %v392, 7
    %v394 = vsub.s32 2, %v393
    %v395 = vrot.slane %v382, %v394
    %v527 = vunpack.c.l.b16 %v254
    %v528 = vunpack.c.h.b16 %v254
    %v529 = vunpack.c.l.b16 %v255
    %v530 = vunpack.c.l.b16 %v256
    %v531 = vunpack.c.h.b16 %v256
    %v532 = vunpack.c.l.b16 %v257
    %v533 = vunpack.c.l.b16 %v258
    %v534 = vunpack.c.h.b16 %v258
    %v535 = vunpack.c.l.b16 %v259
    %v536 = vunpack.c.l.b16 %v260
    %v537 = vunpack.c.h.b16 %v260
    %v538 = vunpack.c.l.b16 %v261
    %v539 = vunpack.c.l.b16 %v262
    %v540 = vunpack.c.h.b16 %v262
    %v541 = vunpack.c.l.b16 %v263
    %v542 = vunpack.c.l.b16 %v264
    %v543 = vunpack.c.h.b16 %v264
    %v544 = vunpack.c.l.b16 %v265
    %v545 = vunpack.c.l.b16 %v266
    %v546 = vunpack.c.h.b16 %v266
    %v547 = vunpack.c.l.b16 %v267
    %v548 = vunpack.c.l.b16 %v268
    %v549 = vunpack.c.h.b16 %v268
    %v550 = vunpack.c.l.b16 %v269
    %v551 = vunpack.c.l.b16 %v270
    %v552 = vunpack.c.h.b16 %v270
    %v553 = vunpack.c.l.b16 %v271
    %v554 = vunpack.c.l.b16 %v272
    %v555 = vunpack.c.h.b16 %v272
    %v556 = vunpack.c.l.b16 %v273
    %v557 = vunpack.c.l.b16 %v274
    %v558 = vunpack.c.h.b16 %v274
    %v559 = vunpack.c.l.b16 %v275
    %v560 = vunpack.c.l.b16 %v276
    %v561 = vunpack.c.h.b16 %v276
    %v562 = vunpack.c.l.b16 %v277
    %v563 = vunpack.c.l.b16 %v278
    %v564 = vunpack.c.h.b16 %v278
    %v565 = vunpack.c.l.b16 %v279
    %v566 = vunpack.c.l.b16 %v280
    %v567 = vunpack.c.h.b16 %v280
    %v568 = vunpack.c.l.b16 %v281
    %v569 = vunpack.c.l.b16 %v282
    %v570 = vunpack.c.h.b16 %v282
    %v571 = vunpack.c.l.b16 %v283
    %v572 = vunpack.c.l.b16 %v284
    %v573 = vunpack.c.h.b16 %v284
    %v574 = vunpack.c.l.b16 %v285
    %v575 = vunpack.c.l.b16 %v286
    %v576 = vunpack.c.h.b16 %v286
    %v577 = vunpack.c.l.b16 %v287
    %v578 = vunpack.c.l.b16 %v288
    %v579 = vunpack.c.h.b16 %v288
    %v580 = vunpack.c.l.b16 %v289
    %v581 = vunpack.c.l.b16 %v290
    %v582 = vunpack.c.h.b16 %v290
    %v583 = vunpack.c.l.b16 %v291
    %v584 = vunpack.c.l.b16 %v292
    %v585 = vunpack.c.h.b16 %v292
    %v586 = vunpack.c.l.b16 %v293
    %v587 = vunpack.c.l.b16 %v294
    %v588 = vunpack.c.h.b16 %v294
    %v589 = vunpack.c.l.b16 %v295
    %v590 = vunpack.c.l.b16 %v296
    %v591 = vunpack.c.h.b16 %v296
    %v592 = vunpack.c.l.b16 %v297
    %v593 = vunpack.c.l.b16 %v298
    %v594 = vunpack.c.h.b16 %v298
    %v595 = vunpack.c.l.b16 %v299
    %v596 = vunpack.c.l.b16 %v300
    %v597 = vunpack.c.h.b16 %v300
    %v598 = vunpack.c.l.b16 %v301
    %v599 = vunpack.c.l.b16 %v302
    %v600 = vunpack.c.h.b16 %v302
    %v601 = vunpack.c.l.b16 %v303
    %v602 = vunpack.c.l.b16 %v304
    %v603 = vunpack.c.h.b16 %v304
    %v604 = vunpack.c.l.b16 %v305
    %v605 = vunpack.c.l.b16 %v306
    %v606 = vunpack.c.h.b16 %v306
    %v607 = vunpack.c.l.b16 %v307
    %v608 = vunpack.c.l.b16 %v308
    %v609 = vunpack.c.h.b16 %v308
    %v610 = vunpack.c.l.b16 %v309
    %v611 = vunpack.c.l.b16 %v310
    %v612 = vunpack.c.h.b16 %v310
    %v613 = vunpack.c.l.b16 %v311
    %v614 = vunpack.c.l.b16 %v312
    %v615 = vunpack.c.h.b16 %v312
    %v616 = vunpack.c.l.b16 %v313
    %v617 = vunpack.c.l.b16 %v314
    %v618 = vunpack.c.h.b16 %v314
    %v619 = vunpack.c.l.b16 %v315
    %v620 = vunpack.c.l.b16 %v316
    %v621 = vunpack.c.h.b16 %v316
    %v622 = vunpack.c.l.b16 %v317
    %v623 = vunpack.c.l.b16 %v318
    %v624 = vunpack.c.h.b16 %v318
    %v625 = vunpack.c.l.b16 %v319
    %v626 = vunpack.c.l.b16 %v320
    %v627 = vunpack.c.h.b16 %v320
    %v628 = vunpack.c.l.b16 %v321
    %v629 = vunpack.c.l.b16 %v322
    %v630 = vunpack.c.h.b16 %v322
    %v631 = vunpack.c.l.b16 %v323
    %v632 = vunpack.c.l.b16 %v324
    %v633 = vunpack.c.h.b16 %v324
    %v634 = vunpack.c.l.b16 %v325
    %v635 = vunpack.c.l.b16 %v326
    %v636 = vunpack.c.h.b16 %v326
    %v637 = vunpack.c.l.b16 %v327
    %v638 = vunpack.c.l.b16 %v328
    %v639 = vunpack.c.h.b16 %v328
    %v640 = vunpack.c.l.b16 %v329
    %v641 = vunpack.c.l.b16 %v330
    %v642 = vunpack.c.h.b16 %v330
    %v643 = vunpack.c.l.b16 %v331
    %v644 = vunpack.c.l.b16 %v332
    %v645 = vunpack.c.h.b16 %v332
    %v646 = vunpack.c.l.b16 %v333
    %v647 = vunpack.c.l.b16 %v334
    %v648 = vunpack.c.h.b16 %v334
    %v649 = vunpack.c.l.b16 %v335
    %v650 = vunpack.c.l.b16 %v336
    %v651 = vunpack.c.h.b16 %v336
    %v652 = vunpack.c.l.b16 %v337
    %v653 = vunpack.c.l.b16 %v338
    %v654 = vunpack.c.h.b16 %v338
    %v655 = vunpack.c.l.b16 %v339
    %v656 = vunpack.c.l.b16 %v340
    %v657 = vunpack.c.h.b16 %v340
    %v658 = vunpack.c.l.b16 %v341
    %v659 = vunpack.c.l.b16 %v342
    %v660 = vunpack.c.h.b16 %v342
    %v661 = vunpack.c.l.b16 %v343
    %v662 = vunpack.c.l.b16 %v344
    %v663 = vunpack.c.h.b16 %v344
    %v664 = vunpack.c.l.b16 %v345
    %v665 = vunpack.c.l.b16 %v346
    %v666 = vunpack.c.h.b16 %v346
    %v667 = vunpack.c.l.b16 %v347
    %v668 = vunpack.c.l.b16 %v348
    %v669 = vunpack.c.h.b16 %v348
    %v670 = vunpack.c.l.b16 %v349
    %v671 = vunpack.c.l.b16 %v350
    %v672 = vunpack.c.h.b16 %v350
    %v673 = vunpack.c.l.b16 %v351
    %v674 = vunpack.c.l.b16 %v352
    %v675 = vunpack.c.h.b16 %v352
    %v676 = vunpack.c.l.b16 %v353
    %v677 = vunpack.c.l.b16 %v354
    %v678 = vunpack.c.h.b16 %v354
    %v679 = vunpack.c.l.b16 %v355
    %v680 = vunpack.c.l.b16 %v356
    %v681 = vunpack.c.h.b16 %v356
    %v682 = vunpack.c.l.b16 %v357
    %v683 = vunpack.c.l.b16 %v358
    %v684 = vunpack.c.h.b16 %v358
    %v685 = vunpack.c.l.b16 %v359
    %v686 = vunpack.c.l.b16 %v360
    %v687 = vunpack.c.h.b16 %v360
    %v688 = vunpack.c.l.b16 %v361
    %v689 = vunpack.c.l.b16 %v362
    %v690 = vunpack.c.h.b16 %v362
    %v691 = vunpack.c.l.b16 %v363
    %v692 = vunpack.c.l.b16 %v364
    %v693 = vunpack.c.h.b16 %v364
    %v694 = vunpack.c.l.b16 %v365
    %v695 = vunpack.c.l.b16 %v366
    %v696 = vunpack.c.h.b16 %v366
    %v697 = vunpack.c.l.b16 %v367
    %v698 = vunpack.c.l.b16 %v368
    %v699 = vunpack.c.h.b16 %v368
    %v700 = vunpack.c.l.b16 %v369
    %v701 = vunpack.c.l.b16 %v370
    %v702 = vunpack.c.h.b16 %v370
    %v703 = vunpack.c.l.b16 %v371
    %v704 = vunpack.c.l.b16 %v372
    %v705 = vunpack.c.h.b16 %v372
    %v706 = vunpack.c.l.b16 %v373
    %v707 = vunpack.c.l.b16 %v374
    %v708 = vunpack.c.h.b16 %v374
    %v709 = vunpack.c.l.b16 %v375
    %v710 = vunpack.c.l.b16 %v376
    %v711 = vunpack.c.h.b16 %v376
    %v712 = vunpack.c.l.b16 %v377
    %v713 = vunpack.c.l.b16 %v378
    %v714 = vunpack.c.h.b16 %v378
    %v715 = vunpack.c.l.b16 %v379
    %v716 = vunpack.c.l.b16 %v380
    %v717 = vunpack.c.h.b16 %v380
    %v718 = vunpack.c.l.b16 %v381
    %v719 = vpack.c.b16 %v530, %v527
    %v720 = vpack.c.b16 %v531, %v528
    %v721 = vpack.c.b16 %v532, %v529
    %v722 = vpack.c.b16 %v536, %v533
    %v723 = vpack.c.b16 %v537, %v534
    %v724 = vpack.c.b16 %v538, %v535
    %v725 = vpack.c.b16 %v542, %v539
    %v726 = vpack.c.b16 %v543, %v540
    %v727 = vpack.c.b16 %v544, %v541
    %v728 = vpack.c.b16 %v548, %v545
    %v729 = vpack.c.b16 %v549, %v546
    %v730 = vpack.c.b16 %v550, %v547
    %v731 = vpack.c.b16 %v554, %v551
    %v732 = vpack.c.b16 %v555, %v552
    %v733 = vpack.c.b16 %v556, %v553
    %v734 = vpack.c.b16 %v560, %v557
    %v735 = vpack.c.b16 %v561, %v558
    %v736 = vpack.c.b16 %v562, %v559
    %v737 = vpack.c.b16 %v566, %v563
    %v738 = vpack.c.b16 %v567, %v564
    %v739 = vpack.c.b16 %v568, %v565
    %v740 = vpack.c.b16 %v572, %v569
    %v741 = vpack.c.b16 %v573, %v570
    %v742 = vpack.c.b16 %v574, %v571
    %v743 = vpack.c.b16 %v578, %v575
    %v744 = vpack.c.b16 %v579, %v576
    %v745 = vpack.c.b16 %v580, %v577
    %v746 = vpack.c.b16 %v584, %v581
    %v747 = vpack.c.b16 %v585, %v582
    %v748 = vpack.c.b16 %v586, %v583
    %v749 = vpack.c.b16 %v590, %v587
    %v750 = vpack.c.b16 %v591, %v588
    %v751 = vpack.c.b16 %v592, %v589
    %v752 = vpack.c.b16 %v596, %v593
    %v753 = vpack.c.b16 %v597, %v594
    %v754 = vpack.c.b16 %v598, %v595
    %v755 = vpack.c.b16 %v602, %v599
    %v756 = vpack.c.b16 %v603, %v600
    %v757 = vpack.c.b16 %v604, %v601
    %v758 = vpack.c.b16 %v608, %v605
    %v759 = vpack.c.b16 %v609, %v606
    %v760 = vpack.c.b16 %v610, %v607
    %v761 = vpack.c.b16 %v614, %v611
    %v762 = vpack.c.b16 %v615, %v612
    %v763 = vpack.c.b16 %v616, %v613
    %v764 = vpack.c.b16 %v620, %v617
    %v765 = vpack.c.b16 %v621, %v618
    %v766 = vpack.c.b16 %v622, %v619
    %v767 = vpack.c.b16 %v626, %v623
    %v768 = vpack.c.b16 %v627, %v624
    %v769 = vpack.c.b16 %v628, %v625
    %v770 = vpack.c.b16 %v632, %v629
    %v771 = vpack.c.b16 %v633, %v630
    %v772 = vpack.c.b16 %v634, %v631
    %v773 = vpack.c.b16 %v638, %v635
    %v774 = vpack.c.b16 %v639, %v636
    %v775 = vpack.c.b16 %v640, %v637
    %v776 = vpack.c.b16 %v644, %v641
    %v777 = vpack.c.b16 %v645, %v642
    %v778 = vpack.c.b16 %v646, %v643
    %v779 = vpack.c.b16 %v650, %v647
    %v780 = vpack.c.b16 %v651, %v648
    %v781 = vpack.c.b16 %v652, %v649
    %v782 = vpack.c.b16 %v656, %v653
    %v783 = vpack.c.b16 %v657, %v654
    %v784 = vpack.c.b16 %v658, %v655
    %v785 = vpack.c.b16 %v662, %v659
    %v786 = vpack.c.b16 %v663, %v660
    %v787 = vpack.c.b16 %v664, %v661
    %v788 = vpack.c.b16 %v668, %v665
    %v789 = vpack.c.b16 %v669, %v666
    %v790 = vpack.c.b16 %v670, %v667
    %v791 = vpack.c.b16 %v674, %v671
    %v792 = vpack.c.b16 %v675, %v672
    %v793 = vpack.c.b16 %v676, %v673
    %v794 = vpack.c.b16 %v680, %v677
    %v795 = vpack.c.b16 %v681, %v678
    %v796 = vpack.c.b16 %v682, %v679
    %v797 = vpack.c.b16 %v686, %v683
    %v798 = vpack.c.b16 %v687, %v684
    %v799 = vpack.c.b16 %v688, %v685
    %v800 = vpack.c.b16 %v692, %v689
    %v801 = vpack.c.b16 %v693, %v690
    %v802 = vpack.c.b16 %v694, %v691
    %v803 = vpack.c.b16 %v698, %v695
    %v804 = vpack.c.b16 %v699, %v696
    %v805 = vpack.c.b16 %v700, %v697
    %v806 = vpack.c.b16 %v704, %v701
    %v807 = vpack.c.b16 %v705, %v702
    %v808 = vpack.c.b16 %v706, %v703
    %v809 = vpack.c.b16 %v710, %v707
    %v810 = vpack.c.b16 %v711, %v708
    %v811 = vpack.c.b16 %v712, %v709
    %v812 = vpack.c.b16 %v716, %v713
    %v813 = vpack.c.b16 %v717, %v714
    %v814 = vpack.c.b16 %v718, %v715
    %911 = vmatprep.subr.bf16.mxu0 %v741
    %912 = vmatpush1.bf16.msra.mxu0 %v740
    %913 = vmatprep.subr.bf16.mxu0 %v738
    %914 = vmatpush1.bf16.msra.mxu0 %v737
    %915 = vmatprep.subr.bf16.mxu0 %v735
    %916 = vmatpush1.bf16.msra.mxu0 %v734
    %917 = vmatprep.subr.bf16.mxu0 %v732
    %918 = vmatpush1.bf16.msra.mxu0 %v731
    %919 = vmatprep.subr.bf16.mxu0 %v729
    %920 = vmatpush1.bf16.msra.mxu0 %v728
    %921 = vmatprep.subr.bf16.mxu0 %v726
    %922 = vmatpush1.bf16.msra.mxu0 %v725
    %923 = vmatprep.subr.bf16.mxu0 %v723
    %924 = vmatpush1.bf16.msra.mxu0 %v722
    %925 = vmatprep.subr.bf16.mxu0 %v720
    %926 = vmatpush1.bf16.msra.mxu0 %v719
    %927 = vmatprep.subr.bf16.mxu0 %v765
    %928 = vmatpush2.bf16.msra.mxu0 %v764
    %929 = vmatprep.subr.bf16.mxu0 %v762
    %930 = vmatpush2.bf16.msra.mxu0 %v761
    %931 = vmatprep.subr.bf16.mxu0 %v759
    %932 = vmatpush2.bf16.msra.mxu0 %v758
    %933 = vmatprep.subr.bf16.mxu0 %v756
    %934 = vmatpush2.bf16.msra.mxu0 %v755
    %935 = vmatprep.subr.bf16.mxu0 %v753
    %936 = vmatpush2.bf16.msra.mxu0 %v752
    %937 = vmatprep.subr.bf16.mxu0 %v750
    %938 = vmatpush2.bf16.msra.mxu0 %v749
    %939 = vmatprep.subr.bf16.mxu0 %v747
    %940 = vmatpush2.bf16.msra.mxu0 %v746
    %941 = vmatprep.subr.bf16.mxu0 %v744
    %942 = vmatpush2.bf16.msra.mxu0 %v743
    %943 = vmatprep.mubr.bf16.mxu0 %v251
    %944 = vmatmul.mubr.bf16.gmra.mxu0 %v250
    %v945 = vpop.f32.mrf.mxu0
    %v946 = vadd.f32 %v387, %v945
    %v947 = vpop.f32.mrf.mxu0
    %v948 = vadd.f32 %v391, %v947
    %v949 = vpop.f32.mrf.mxu0
    %v950 = vpop.f32.mrf.mxu0
    %951 = vdwg.mxu0
    %952 = vmatprep.subr.bf16.mxu0 %v789
    %953 = vmatpush1.bf16.msra.mxu0 %v788
    %954 = vmatprep.subr.bf16.mxu0 %v786
    %955 = vmatpush1.bf16.msra.mxu0 %v785
    %956 = vmatprep.subr.bf16.mxu0 %v783
    %957 = vmatpush1.bf16.msra.mxu0 %v782
    %958 = vmatprep.subr.bf16.mxu0 %v780
    %959 = vmatpush1.bf16.msra.mxu0 %v779
    %960 = vmatprep.subr.bf16.mxu0 %v777
    %961 = vmatpush1.bf16.msra.mxu0 %v776
    %962 = vmatprep.subr.bf16.mxu0 %v774
    %963 = vmatpush1.bf16.msra.mxu0 %v773
    %964 = vmatprep.subr.bf16.mxu0 %v771
    %965 = vmatpush1.bf16.msra.mxu0 %v770
    %966 = vmatprep.subr.bf16.mxu0 %v768
    %967 = vmatpush1.bf16.msra.mxu0 %v767
    %968 = vmatprep.subr.bf16.mxu0 %v813
    %969 = vmatpush2.bf16.msra.mxu0 %v812
    %970 = vmatprep.subr.bf16.mxu0 %v810
    %971 = vmatpush2.bf16.msra.mxu0 %v809
    %972 = vmatprep.subr.bf16.mxu0 %v807
    %973 = vmatpush2.bf16.msra.mxu0 %v806
    %974 = vmatprep.subr.bf16.mxu0 %v804
    %975 = vmatpush2.bf16.msra.mxu0 %v803
    %976 = vmatprep.subr.bf16.mxu0 %v801
    %977 = vmatpush2.bf16.msra.mxu0 %v800
    %978 = vmatprep.subr.bf16.mxu0 %v798
    %979 = vmatpush2.bf16.msra.mxu0 %v797
    %980 = vmatprep.subr.bf16.mxu0 %v795
    %981 = vmatpush2.bf16.msra.mxu0 %v794
    %982 = vmatprep.subr.bf16.mxu0 %v792
    %983 = vmatpush2.bf16.msra.mxu0 %v791
    %984 = vmatprep.mubr.bf16.mxu0 %v253
    %985 = vmatmul.mubr.bf16.gmra.mxu0 %v252
    %v986 = vpop.f32.mrf.mxu0
    %v987 = vadd.f32 %v946, %v986
    %v988 = vpop.f32.mrf.mxu0
    %v989 = vadd.f32 %v948, %v988
    %v990 = vpop.f32.mrf.mxu0
    %v991 = vpop.f32.mrf.mxu0
    %992 = vdwg.mxu0
    %993 = vmatprep.subr.bf16.mxu0 0
    %994 = vmatpush1.bf16.msra.mxu0 %v742
    %995 = vmatprep.subr.bf16.mxu0 0
    %996 = vmatpush1.bf16.msra.mxu0 %v739
    %997 = vmatprep.subr.bf16.mxu0 0
    %998 = vmatpush1.bf16.msra.mxu0 %v736
    %999 = vmatprep.subr.bf16.mxu0 0
    %1000 = vmatpush1.bf16.msra.mxu0 %v733
    %1001 = vmatprep.subr.bf16.mxu0 0
    %1002 = vmatpush1.bf16.msra.mxu0 %v730
    %1003 = vmatprep.subr.bf16.mxu0 0
    %1004 = vmatpush1.bf16.msra.mxu0 %v727
    %1005 = vmatprep.subr.bf16.mxu0 0
    %1006 = vmatpush1.bf16.msra.mxu0 %v724
    %1007 = vmatprep.subr.bf16.mxu0 0
    %1008 = vmatpush1.bf16.msra.mxu0 %v721
    %1009 = vmatprep.subr.bf16.mxu0 0
    %1010 = vmatpush2.bf16.msra.mxu0 %v766
    %1011 = vmatprep.subr.bf16.mxu0 0
    %1012 = vmatpush2.bf16.msra.mxu0 %v763
    %1013 = vmatprep.subr.bf16.mxu0 0
    %1014 = vmatpush2.bf16.msra.mxu0 %v760
    %1015 = vmatprep.subr.bf16.mxu0 0
    %1016 = vmatpush2.bf16.msra.mxu0 %v757
    %1017 = vmatprep.subr.bf16.mxu0 0
    %1018 = vmatpush2.bf16.msra.mxu0 %v754
    %1019 = vmatprep.subr.bf16.mxu0 0
    %1020 = vmatpush2.bf16.msra.mxu0 %v751
    %1021 = vmatprep.subr.bf16.mxu0 0
    %1022 = vmatpush2.bf16.msra.mxu0 %v748
    %1023 = vmatprep.subr.bf16.mxu0 0
    %1024 = vmatpush2.bf16.msra.mxu0 %v745
    %1025 = vmatprep.mubr.bf16.mxu0 %v251
    %1026 = vmatmul.mubr.bf16.gmra.mxu0 %v250
    %v1027 = vpop.f32.mrf.mxu0
    %v1028 = vadd.f32 %v395, %v1027
    %v1029 = vpop.f32.mrf.mxu0
    %v1030 = vpop.f32.mrf.mxu0
    %v1031 = vpop.f32.mrf.mxu0
    %1032 = vdwg.mxu0
    %1033 = vmatprep.subr.bf16.mxu0 0
    %1034 = vmatpush1.bf16.msra.mxu0 %v790
    %1035 = vmatprep.subr.bf16.mxu0 0
    %1036 = vmatpush1.bf16.msra.mxu0 %v787
    %1037 = vmatprep.subr.bf16.mxu0 0
    %1038 = vmatpush1.bf16.msra.mxu0 %v784
    %1039 = vmatprep.subr.bf16.mxu0 0
    %1040 = vmatpush1.bf16.msra.mxu0 %v781
    %1041 = vmatprep.subr.bf16.mxu0 0
    %1042 = vmatpush1.bf16.msra.mxu0 %v778
    %1043 = vmatprep.subr.bf16.mxu0 0
    %1044 = vmatpush1.bf16.msra.mxu0 %v775
    %1045 = vmatprep.subr.bf16.mxu0 0
    %1046 = vmatpush1.bf16.msra.mxu0 %v772
    %1047 = vmatprep.subr.bf16.mxu0 0
    %1048 = vmatpush1.bf16.msra.mxu0 %v769
    %1049 = vmatprep.subr.bf16.mxu0 0
    %1050 = vmatpush2.bf16.msra.mxu0 %v814
    %1051 = vmatprep.subr.bf16.mxu0 0
    %1052 = vmatpush2.bf16.msra.mxu0 %v811
    %1053 = vmatprep.subr.bf16.mxu0 0
    %1054 = vmatpush2.bf16.msra.mxu0 %v808
    %1055 = vmatprep.subr.bf16.mxu0 0
    %1056 = vmatpush2.bf16.msra.mxu0 %v805
    %1057 = vmatprep.subr.bf16.mxu0 0
    %1058 = vmatpush2.bf16.msra.mxu0 %v802
    %1059 = vmatprep.subr.bf16.mxu0 0
    %1060 = vmatpush2.bf16.msra.mxu0 %v799
    %1061 = vmatprep.subr.bf16.mxu0 0
    %1062 = vmatpush2.bf16.msra.mxu0 %v796
    %1063 = vmatprep.subr.bf16.mxu0 0
    %1064 = vmatpush2.bf16.msra.mxu0 %v793
    %1065 = vmatprep.mubr.bf16.mxu0 %v253
    %1066 = vmatmul.mubr.bf16.gmra.mxu0 %v252
    %v1067 = vpop.f32.mrf.mxu0
    %v1068 = vadd.f32 %v1028, %v1067
    %v1069 = vpop.f32.mrf.mxu0
    %v1070 = vpop.f32.mrf.mxu0
    %v1071 = vpop.f32.mrf.mxu0
    %1072 = vdwg.mxu0
    %v1073 = vmax.f32 %v987, 0.0
    %v1074 = vmax.f32 %v989, 0.0
    %v1075 = vmax.f32 %v1068, 0.0
    %v1076 = vpack.c.bf16 %v1073, %v1073
    %v1077 = vpack.c.bf16 %v1074, %v1074
    %v1078 = vpack.c.bf16 %v1075, %v1075
    %v1079 = vld [vmem:[#allocation9] sm:$0xf]
    %v1080 = vld [vmem:[#allocation9 + $0x4] sm:$0xf]
    %v1081 = vld [vmem:[#allocation9 + $0x8] sm:$0xf]
    %v1082 = vld [vmem:[#allocation9 + $0xc] sm:$0xf]
    %v1083 = vld [vmem:[#allocation9 + $0x10] sm:$0xf]
    %v1084 = vld [vmem:[#allocation9 + $0x14] sm:$0xf]
    %v1085 = vld [vmem:[#allocation9 + $0x18] sm:$0xf]
    %v1086 = vld [vmem:[#allocation9 + $0x1c] sm:$0xf]
    %v1087 = vld [vmem:[#allocation9 + $0x20] sm:$0xf]
    %v1088 = vld [vmem:[#allocation9 + $0x24] sm:$0xf]
    %v1089 = vld [vmem:[#allocation9 + $0x28] sm:$0xf]
    %v1090 = vld [vmem:[#allocation9 + $0x2c] sm:$0xf]
    %v1091 = vld [vmem:[#allocation9 + $0x30] sm:$0xf]
    %v1092 = vld [vmem:[#allocation9 + $0x34] sm:$0xf]
    %v1093 = vld [vmem:[#allocation9 + $0x38] sm:$0xf]
    %v1094 = vld [vmem:[#allocation9 + $0x3c] sm:$0xf]
    %v1095 = vld [vmem:[#allocation9 + $0x40] sm:$0xf]
    %v1096 = vld [vmem:[#allocation9 + $0x44] sm:$0xf]
    %v1097 = vld [vmem:[#allocation9 + $0x48] sm:$0xf]
    %v1098 = vld [vmem:[#allocation9 + $0x4c] sm:$0xf]
    %v1099 = vld [vmem:[#allocation9 + $0x50] sm:$0xf]
    %v1100 = vld [vmem:[#allocation9 + $0x54] sm:$0xf]
    %v1101 = vld [vmem:[#allocation9 + $0x58] sm:$0xf]
    %v1102 = vld [vmem:[#allocation9 + $0x5c] sm:$0xf]
    %v1103 = vld [vmem:[#allocation9 + $0x60] sm:$0xf]
    %v1104 = vld [vmem:[#allocation9 + $0x64] sm:$0xf]
    %v1105 = vld [vmem:[#allocation9 + $0x68] sm:$0xf]
    %v1106 = vld [vmem:[#allocation9 + $0x6c] sm:$0xf]
    %v1107 = vld [vmem:[#allocation9 + $0x70] sm:$0xf]
    %v1108 = vld [vmem:[#allocation9 + $0x74] sm:$0xf]
    %v1109 = vld [vmem:[#allocation9 + $0x78] sm:$0xf]
    %v1110 = vld [vmem:[#allocation9 + $0x7c] sm:$0xf]
    %v1111 = vld [vmem:[#allocation9 + $0x80] sm:$0xf]
    %v1112 = vld [vmem:[#allocation9 + $0x84] sm:$0xf]
    %v1113 = vld [vmem:[#allocation9 + $0x88] sm:$0xf]
    %v1114 = vld [vmem:[#allocation9 + $0x8c] sm:$0xf]
    %v1115 = vld [vmem:[#allocation9 + $0x90] sm:$0xf]
    %v1116 = vld [vmem:[#allocation9 + $0x94] sm:$0xf]
    %v1117 = vld [vmem:[#allocation9 + $0x98] sm:$0xf]
    %v1118 = vld [vmem:[#allocation9 + $0x9c] sm:$0xf]
    %v1119 = vld [vmem:[#allocation9 + $0xa0] sm:$0xf]
    %v1120 = vld [vmem:[#allocation9 + $0xa4] sm:$0xf]
    %v1121 = vld [vmem:[#allocation9 + $0xa8] sm:$0xf]
    %v1122 = vld [vmem:[#allocation9 + $0xac] sm:$0xf]
    %v1123 = vld [vmem:[#allocation9 + $0xb0] sm:$0xf]
    %v1124 = vld [vmem:[#allocation9 + $0xb4] sm:$0xf]
    %v1125 = vld [vmem:[#allocation9 + $0xb8] sm:$0xf]
    %v1126 = vld [vmem:[#allocation9 + $0xbc] sm:$0xf]
    %v1127 = vld [vmem:[%s7] sm:$0x1]
    %v1129 = vlaneseq
    %v1130 = vshrl.u32 %v1129, 7
    %v1131 = vsub.s32 0, %v1130
    %v1132 = vrot.slane %v1127, %v1131
    %v1182 = vunpack.c.l.b16 %v1079
    %v1183 = vunpack.c.l.b16 %v1080
    %v1184 = vunpack.c.l.b16 %v1081
    %v1185 = vunpack.c.l.b16 %v1082
    %v1186 = vunpack.c.l.b16 %v1083
    %v1187 = vunpack.c.l.b16 %v1084
    %v1188 = vunpack.c.l.b16 %v1085
    %v1189 = vunpack.c.l.b16 %v1086
    %v1190 = vunpack.c.l.b16 %v1087
    %v1191 = vunpack.c.l.b16 %v1088
    %v1192 = vunpack.c.l.b16 %v1089
    %v1193 = vunpack.c.l.b16 %v1090
    %v1194 = vunpack.c.l.b16 %v1091
    %v1195 = vunpack.c.l.b16 %v1092
    %v1196 = vunpack.c.l.b16 %v1093
    %v1197 = vunpack.c.l.b16 %v1094
    %v1198 = vunpack.c.l.b16 %v1095
    %v1199 = vunpack.c.l.b16 %v1096
    %v1200 = vunpack.c.l.b16 %v1097
    %v1201 = vunpack.c.l.b16 %v1098
    %v1202 = vunpack.c.l.b16 %v1099
    %v1203 = vunpack.c.l.b16 %v1100
    %v1204 = vunpack.c.l.b16 %v1101
    %v1205 = vunpack.c.l.b16 %v1102
    %v1206 = vunpack.c.l.b16 %v1103
    %v1207 = vunpack.c.l.b16 %v1104
    %v1208 = vunpack.c.l.b16 %v1105
    %v1209 = vunpack.c.l.b16 %v1106
    %v1210 = vunpack.c.l.b16 %v1107
    %v1211 = vunpack.c.l.b16 %v1108
    %v1212 = vunpack.c.l.b16 %v1109
    %v1213 = vunpack.c.l.b16 %v1110
    %v1214 = vunpack.c.l.b16 %v1111
    %v1215 = vunpack.c.l.b16 %v1112
    %v1216 = vunpack.c.l.b16 %v1113
    %v1217 = vunpack.c.l.b16 %v1114
    %v1218 = vunpack.c.l.b16 %v1115
    %v1219 = vunpack.c.l.b16 %v1116
    %v1220 = vunpack.c.l.b16 %v1117
    %v1221 = vunpack.c.l.b16 %v1118
    %v1222 = vunpack.c.l.b16 %v1119
    %v1223 = vunpack.c.l.b16 %v1120
    %v1224 = vunpack.c.l.b16 %v1121
    %v1225 = vunpack.c.l.b16 %v1122
    %v1226 = vunpack.c.l.b16 %v1123
    %v1227 = vunpack.c.l.b16 %v1124
    %v1228 = vunpack.c.l.b16 %v1125
    %v1229 = vunpack.c.l.b16 %v1126
    %v1230 = vpack.c.b16 %v1183, %v1182
    %v1231 = vpack.c.b16 %v1185, %v1184
    %v1232 = vpack.c.b16 %v1187, %v1186
    %v1233 = vpack.c.b16 %v1189, %v1188
    %v1234 = vpack.c.b16 %v1191, %v1190
    %v1235 = vpack.c.b16 %v1193, %v1192
    %v1236 = vpack.c.b16 %v1195, %v1194
    %v1237 = vpack.c.b16 %v1197, %v1196
    %v1238 = vpack.c.b16 %v1199, %v1198
    %v1239 = vpack.c.b16 %v1201, %v1200
    %v1240 = vpack.c.b16 %v1203, %v1202
    %v1241 = vpack.c.b16 %v1205, %v1204
    %v1242 = vpack.c.b16 %v1207, %v1206
    %v1243 = vpack.c.b16 %v1209, %v1208
    %v1244 = vpack.c.b16 %v1211, %v1210
    %v1245 = vpack.c.b16 %v1213, %v1212
    %v1246 = vpack.c.b16 %v1215, %v1214
    %v1247 = vpack.c.b16 %v1217, %v1216
    %v1248 = vpack.c.b16 %v1219, %v1218
    %v1249 = vpack.c.b16 %v1221, %v1220
    %v1250 = vpack.c.b16 %v1223, %v1222
    %v1251 = vpack.c.b16 %v1225, %v1224
    %v1252 = vpack.c.b16 %v1227, %v1226
    %v1253 = vpack.c.b16 %v1229, %v1228
    %1278 = vmatprep.subr.bf16.mxu0 0
    %1279 = vmatpush1.bf16.msra.mxu0 %v1237
    %1280 = vmatprep.subr.bf16.mxu0 0
    %1281 = vmatpush1.bf16.msra.mxu0 %v1236
    %1282 = vmatprep.subr.bf16.mxu0 0
    %1283 = vmatpush1.bf16.msra.mxu0 %v1235
    %1284 = vmatprep.subr.bf16.mxu0 0
    %1285 = vmatpush1.bf16.msra.mxu0 %v1234
    %1286 = vmatprep.subr.bf16.mxu0 0
    %1287 = vmatpush1.bf16.msra.mxu0 %v1233
    %1288 = vmatprep.subr.bf16.mxu0 0
    %1289 = vmatpush1.bf16.msra.mxu0 %v1232
    %1290 = vmatprep.subr.bf16.mxu0 0
    %1291 = vmatpush1.bf16.msra.mxu0 %v1231
    %1292 = vmatprep.subr.bf16.mxu0 0
    %1293 = vmatpush1.bf16.msra.mxu0 %v1230
    %1294 = vmatprep.subr.bf16.mxu0 0
    %1295 = vmatpush2.bf16.msra.mxu0 %v1245
    %1296 = vmatprep.subr.bf16.mxu0 0
    %1297 = vmatpush2.bf16.msra.mxu0 %v1244
    %1298 = vmatprep.subr.bf16.mxu0 0
    %1299 = vmatpush2.bf16.msra.mxu0 %v1243
    %1300 = vmatprep.subr.bf16.mxu0 0
    %1301 = vmatpush2.bf16.msra.mxu0 %v1242
    %1302 = vmatprep.subr.bf16.mxu0 0
    %1303 = vmatpush2.bf16.msra.mxu0 %v1241
    %1304 = vmatprep.subr.bf16.mxu0 0
    %1305 = vmatpush2.bf16.msra.mxu0 %v1240
    %1306 = vmatprep.subr.bf16.mxu0 0
    %1307 = vmatpush2.bf16.msra.mxu0 %v1239
    %1308 = vmatprep.subr.bf16.mxu0 0
    %1309 = vmatpush2.bf16.msra.mxu0 %v1238
    %1310 = vmatprep.mubr.bf16.mxu0 %v1077
    %1311 = vmatmul.mubr.bf16.gmra.mxu0 %v1076
    %v1312 = vpop.f32.mrf.mxu0
    %v1313 = vadd.f32 %v1132, %v1312
    %v1314 = vpop.f32.mrf.mxu0
    %v1315 = vpop.f32.mrf.mxu0
    %v1316 = vpop.f32.mrf.mxu0
    %1317 = vdwg.mxu0
    %1318 = vmatprep.subr.bf16.mxu0 0
    %1319 = vmatpush1.bf16.msra.mxu0 %v1253
    %1320 = vmatprep.subr.bf16.mxu0 0
    %1321 = vmatpush1.bf16.msra.mxu0 %v1252
    %1322 = vmatprep.subr.bf16.mxu0 0
    %1323 = vmatpush1.bf16.msra.mxu0 %v1251
    %1324 = vmatprep.subr.bf16.mxu0 0
    %1325 = vmatpush1.bf16.msra.mxu0 %v1250
    %1326 = vmatprep.subr.bf16.mxu0 0
    %1327 = vmatpush1.bf16.msra.mxu0 %v1249
    %1328 = vmatprep.subr.bf16.mxu0 0
    %1329 = vmatpush1.bf16.msra.mxu0 %v1248
    %1330 = vmatprep.subr.bf16.mxu0 0
    %1331 = vmatpush1.bf16.msra.mxu0 %v1247
    %1332 = vmatprep.subr.bf16.mxu0 0
    %1333 = vmatpush1.bf16.msra.mxu0 %v1246
    %1334 = vmatprep.subr.bf16.mxu0 0
    %1335 = vmatpush2.bf16.msra.mxu0 0
    %1336 = vmatprep.subr.bf16.mxu0 0
    %1337 = vmatpush2.bf16.msra.mxu0 0
    %1338 = vmatprep.subr.bf16.mxu0 0
    %1339 = vmatpush2.bf16.msra.mxu0 0
    %1340 = vmatprep.subr.bf16.mxu0 0
    %1341 = vmatpush2.bf16.msra.mxu0 0
    %1342 = vmatprep.subr.bf16.mxu0 0
    %1343 = vmatpush2.bf16.msra.mxu0 0
    %1344 = vmatprep.subr.bf16.mxu0 0
    %1345 = vmatpush2.bf16.msra.mxu0 0
    %1346 = vmatprep.subr.bf16.mxu0 0
    %1347 = vmatpush2.bf16.msra.mxu0 0
    %1348 = vmatprep.subr.bf16.mxu0 0
    %1349 = vmatpush2.bf16.msra.mxu0 0
    %1350 = vmatprep.mubr.bf16.mxu0 0
    %1351 = vmatmul.mubr.bf16.gmra.mxu0 %v1078
    %v1352 = vpop.f32.mrf.mxu0
    %v1353 = vadd.f32 %v1313, %v1352
    %v1354 = vpop.f32.mrf.mxu0
    %v1355 = vpop.f32.mrf.mxu0
    %v1356 = vpop.f32.mrf.mxu0
    %1357 = vdwg.mxu0
    %s1358 = sld [smem:[#allocation2]]
    %v1359 = vtanh.pop %v1353
    %v1360 = vstv %s1358
    %v1361 = vmul.f32 %v1360, %v1359
    %1362 = vst [vmem:[#allocation11] sm:$0xff] %v1361
    // Predicated region
    $region50: #{tpu_custom_call.1} parent=1 // pred_check
      _
    $region51: #{tpu_custom_call.1} parent=1 // pred_check_branch
      %1364 = sbr.rel (0) target = $region53
    $region52: #{tpu_custom_call.1} parent=1 // pred_region
      %s1366 = ssub.s32 128, 128
      %1367 = vsyncadd [#allocation5], %s1366
      %s1369 = sshll.u32 [#allocation11], 4
      %s1370 = int_to_ptr.vmem [resolvable:$true] %s1369
      %1372 = dma.vmem_to_hbm [thread:$0]  %s1370, 128, %s8, [#allocation5]
    $region53: #{tpu_custom_call.1} parent=1 // pred_fallthru
      _
    // Predicated region
    $region54: #{tpu_custom_call.1} parent=1 // pred_check
      _
    $region55: #{tpu_custom_call.1} parent=1 // pred_check_branch
      %1374 = sbr.rel (0) target = $region57
    $region56: #{tpu_custom_call.1} parent=1 // pred_region
      %1375 = dma.done [#allocation5], 128
    $region57: #{tpu_custom_call.1} parent=1 // pred_fallthru
      _
    %1376 = vsyncpa [#allocation4], 1
    %1377 = vsyncpa [#allocation7], 1
    %1378 = vsyncpa [#allocation10], 1
    %1379 = vsyncpa [#allocation5], 1

</llo_original>
